<compile_context>
chip_gen: v5e
topology: v5e:2x2
jax: 0.10.0
libtpu: 0.0.40
codegen_flags: <defaults>
</compile_context>

<pallas_src>
import functools

import jax
import jax.numpy as jnp
import numpy as np
from jax.experimental import pallas as pl
from jax.experimental.pallas import tpu as pltpu

LANE = 128


# -----------------------------------------------------------------------------
# Small helpers
# -----------------------------------------------------------------------------
def _cdiv(a: int, b: int) -> int:
    return -(-a // b)


def _round_up(x: int, m: int) -> int:
    return _cdiv(x, m) * m


def _pad_to(a, shape):
    return jnp.pad(a, [(0, s - d) for d, s in zip(a.shape, shape)])


def _vmem_budget_bytes() -> int:
    """Generation-aware VMEM budget: ~54 MiB on v7x (64 MiB phys/TC), ~108 MiB on v5e/v6e."""
    try:
        cap = int(pltpu.get_tpu_info().vmem_capacity_bytes)
    except Exception:
        cap = 64 << 20  # conservative fallback (v7x per-TC)
    return min(int(cap * 0.85), 110 << 20)


def _trunk_vmem_bytes(tb, tk, h, n_lin, w_bufs):
    return (2 * tb * tk * 2                 # x tile (bf16, double-buffered)
            + 2 * tk * h * 2                # w_in tile (bf16, double-buffered)
            + w_bufs * n_lin * h * h * 2    # w_lin (bf16, resident)
            + w_bufs * (n_lin + 1) * h * 4  # biases (f32)
            + tb * h * 4                    # f32 accumulator scratch
            + 2 * tb * h * 2)               # h output (bf16, double-buffered)


def _head_vmem_bytes(tb, h, tn, out_itemsize):
    return 2 * (tb * h * 2 + h * tn * 2 + tn * 4 + tb * tn * out_itemsize)


def _invariant_spec(block_shape, index_map, single_buffer):
    """BlockSpec for grid-invariant operands: single-buffered when supported."""
    if single_buffer and hasattr(pl, "Buffered"):
        try:
            return pl.BlockSpec(block_shape, index_map, pipeline_mode=pl.Buffered(1))
        except TypeError:
            pass
    return pl.BlockSpec(block_shape, index_map)


# -----------------------------------------------------------------------------
# Kernels
# -----------------------------------------------------------------------------
def _make_trunk_kernel(num_lin_blocks: int, tanh_gelu: bool):
    gelu = functools.partial(jax.nn.gelu, approximate=tanh_gelu)

    def kernel(x_ref, w_in_ref, b_in_ref, w_lin_ref, b_lin_ref, h_ref, acc_ref):
        k = pl.program_id(1)

        # ---- input linear, K-tiled accumulation into f32 scratch -------------
        @pl.when(k == 0)
        def _init():
            acc_ref[...] = jnp.zeros_like(acc_ref)

        acc_ref[...] += jnp.dot(x_ref[...], w_in_ref[...],
                                preferred_element_type=jnp.float32)

        # ---- residual trunk on the last K step --------------------------------
        @pl.when(k == pl.num_programs(1) - 1)
        def _finish():
            h = gelu(acc_ref[...] + b_in_ref[...])
            # x2 = x; x = gelu(L_{2i}(x)); x = gelu(L_{2i+1}(x)) + x2
            for i in range(num_lin_blocks):
                h2 = h
                h = gelu(jnp.dot(h.astype(jnp.bfloat16), w_lin_ref[2 * i],
                                 preferred_element_type=jnp.float32)
                         + b_lin_ref[2 * i])
                h = gelu(jnp.dot(h.astype(jnp.bfloat16), w_lin_ref[2 * i + 1],
                                 preferred_element_type=jnp.float32)
                         + b_lin_ref[2 * i + 1]) + h2
            h_ref[...] = h.astype(h_ref.dtype)

    return kernel


def _make_head_kernel(mode: str):
    def kernel(h_ref, w_ref, b_ref, o_ref):
        y = jnp.dot(h_ref[...], w_ref[...],
                    preferred_element_type=jnp.float32) + b_ref[...]
        if mode == "emb":
            y = jax.nn.sigmoid(y)
        o_ref[...] = y.astype(o_ref.dtype)

    return kernel


# -----------------------------------------------------------------------------
# pallas_call drivers
# -----------------------------------------------------------------------------
def _run_trunk(x_p, w_in, b_in, w_lin, b_lin, *, num_lin_blocks, TB, TK, nb, nk,
               H, tanh_gelu, vmem_limit, single_buffer):
    n_lin = w_lin.shape[0]
    B, IN_p = nb * TB, nk * TK
    kernel = _make_trunk_kernel(num_lin_blocks, tanh_gelu)
    inv = functools.partial(_invariant_spec, single_buffer=single_buffer)

    grid_spec = pltpu.PrefetchScalarGridSpec(
        num_scalar_prefetch=0,
        grid=(nb, nk),                                            # reduction axis last
        in_specs=[
            pl.BlockSpec((TB, TK), lambda i, k: (i, k)),          # x
            pl.BlockSpec((TK, H), lambda i, k: (k, 0)),           # w_in (K-tiled)
            inv((1, H), lambda i, k: (0, 0)),                     # b_in (invariant)
            inv((n_lin, H, H), lambda i, k: (0, 0, 0)),           # w_lin (invariant)
            inv((n_lin, 1, H), lambda i, k: (0, 0, 0)),           # b_lin (invariant)
        ],
        out_specs=pl.BlockSpec((TB, H), lambda i, k: (i, 0)),     # bf16 hidden acts
        scratch_shapes=[pltpu.VMEM((TB, H), jnp.float32)],
    )

    flops = 2 * B * (IN_p * H + n_lin * H * H)
    transcendentals = B * H * (1 + n_lin)
    bytes_accessed = (nb * w_in.size * 2 + x_p.size * 2 + w_lin.size * 2
                      + (b_in.size + b_lin.size) * 4 + B * H * 2)

    return pl.pallas_call(
        kernel,
        out_shape=jax.ShapeDtypeStruct((B, H), jnp.bfloat16),
        grid_spec=grid_spec,
        compiler_params=pltpu.CompilerParams(
            dimension_semantics=("parallel", "arbitrary"),
            vmem_limit_bytes=vmem_limit),
        cost_estimate=pl.CostEstimate(flops=flops,
                                      transcendentals=transcendentals,
                                      bytes_accessed=bytes_accessed),
    )(x_p, w_in, b_in, w_lin, b_lin)


_SINGLE_BUFFER_OK = None  # lazily probed once


def _run_trunk_with_fallback(*args, **kwargs):
    global _SINGLE_BUFFER_OK
    if _SINGLE_BUFFER_OK is not False:
        try:
            out = _run_trunk(*args, single_buffer=True, **kwargs)
            _SINGLE_BUFFER_OK = True
            return out
        except Exception:
            _SINGLE_BUFFER_OK = False
    return _run_trunk(*args, single_buffer=False, **kwargs)


def _run_head(h_p, w_h, b_h, *, mode, TB, TN, nb, nj, H, vmem_limit, out_dtype):
    B, OUT_p = nb * TB, nj * TN
    kernel = _make_head_kernel(mode)

    grid_spec = pltpu.PrefetchScalarGridSpec(
        num_scalar_prefetch=0,
        grid=(nb, nj),
        in_specs=[
            pl.BlockSpec((TB, H), lambda i, j: (i, 0)),           # hidden acts
            pl.BlockSpec((H, TN), lambda i, j: (0, j)),           # w_head (N-tiled)
            pl.BlockSpec((1, TN), lambda i, j: (0, j)),           # b_head
        ],
        out_specs=pl.BlockSpec((TB, TN), lambda i, j: (i, j)),
    )

    flops = 2 * B * H * OUT_p
    transcendentals = B * OUT_p if mode == "emb" else 0
    bytes_accessed = (h_p.size * 2 + nb * w_h.size * 2 + b_h.size * 4
                      + B * OUT_p * jnp.dtype(out_dtype).itemsize)

    return pl.pallas_call(
        kernel,
        out_shape=jax.ShapeDtypeStruct((B, OUT_p), out_dtype),
        grid_spec=grid_spec,
        compiler_params=pltpu.CompilerParams(
            dimension_semantics=("parallel", "parallel"),
            vmem_limit_bytes=vmem_limit),
        cost_estimate=pl.CostEstimate(flops=flops,
                                      transcendentals=transcendentals,
                                      bytes_accessed=bytes_accessed),
    )(h_p, w_h, b_h)


# -----------------------------------------------------------------------------
# Wrapper
# -----------------------------------------------------------------------------
def methyl_mlp_forward(x, params, *, num_lin_blocks, cls=False, regression=False,
                       tanh_gelu=True, out_dtype=jnp.float32):
    """Forward pass of MethylMLP.

    tanh_gelu: use the tanh GELU approximation (EUP) instead of PyTorch's erf default.
    out_dtype: pass jnp.bfloat16 to halve output writeback (useful for mode='emb').
    """
    if regression:
        w_head, b_head, mode = params["w_reg"], params["b_reg"], "reg"
    elif cls:
        w_head, b_head, mode = params["w_out"], params["b_out"], "cls"
    else:
        w_head, b_head, mode = params["w_emb"], params["b_emb"], "emb"

    batch, num_inputs = x.shape
    hidden = params["w_in"].shape[1]
    out_dim = w_head.shape[1]
    n_lin = 2 * num_lin_blocks
    n_lin_pad = max(n_lin, 1)

    # ---- generation-aware tile policy ----------------------------------------
    budget = _vmem_budget_bytes()
    big_vmem = budget >= (96 << 20)        # v5e/v6e (128 MiB) vs v7x (64 MiB)
    TB_MAX = 512 if big_vmem else 256      # batch tile cap
    TK_MAX = 2048 if big_vmem else 1024    # input-linear K tile cap
    TN_MAX = 2048 if big_vmem else 1024    # head output tile cap

    H = _round_up(hidden, LANE)            # hidden, lane-padded

    # batch tiling: multiple of 16 (bf16 sublane tile), minimal padding waste;
    # on a v7x-like budget force >=2 tiles so both TensorCores get work.
    nb = _cdiv(batch, TB_MAX)
    if not big_vmem and nb == 1 and batch >= 256:
        nb = 2
    TB = _round_up(_cdiv(batch, nb), 16)
    B = nb * TB

    # K tiling of the input linear; shrink to fit the VMEM budget.
    while TK_MAX > 512 and _trunk_vmem_bytes(TB, TK_MAX, H, n_lin_pad, 1) > budget:
        TK_MAX //= 2
    IN_lane = _round_up(num_inputs, LANE)
    nk = _cdiv(IN_lane, TK_MAX)
    TK = _round_up(_cdiv(IN_lane, nk), LANE)
    IN_p = nk * TK

    # head output tiling (makes emb mode with OUT = num_inputs feasible).
    while TN_MAX > 256 and _head_vmem_bytes(TB, H, TN_MAX,
                                            jnp.dtype(out_dtype).itemsize) > budget:
        TN_MAX //= 2
    OUT_lane = _round_up(out_dim, LANE)
    nj = _cdiv(OUT_lane, TN_MAX)
    TN = _round_up(_cdiv(OUT_lane, nj), LANE)
    OUT_p = nj * TN

    # ---- pad + cast operands (matmul operands bf16, biases f32) --------------
    # Zero padding is exact: padded columns stay 0 through GELU/residuals and
    # padded weight rows contribute 0.
    x_p = _pad_to(x, (B, IN_p)).astype(jnp.bfloat16)
    w_in = _pad_to(params["w_in"], (IN_p, H)).astype(jnp.bfloat16)
    b_in = _pad_to(params["b_in"], (1, H)).astype(jnp.float32)
    w_lin = _pad_to(params["w_lin"], (n_lin_pad, H, H)).astype(jnp.bfloat16)
    b_lin = _pad_to(params["b_lin"], (n_lin_pad, 1, H)).astype(jnp.float32)
    w_h = _pad_to(w_head, (H, OUT_p)).astype(jnp.bfloat16)
    b_h = _pad_to(b_head, (1, OUT_p)).astype(jnp.float32)

    # ---- trunk: input linear (K-tiled) + residual blocks ----------------------
    h_p = _run_trunk_with_fallback(
        x_p, w_in, b_in, w_lin, b_lin,
        num_lin_blocks=num_lin_blocks, TB=TB, TK=TK, nb=nb, nk=nk, H=H,
        tanh_gelu=tanh_gelu, vmem_limit=budget)

    # ---- head: N-tiled linear (+ sigmoid for emb) ------------------------------
    out_p = _run_head(h_p, w_h, b_h, mode=mode, TB=TB, TN=TN, nb=nb, nj=nj, H=H,
                      vmem_limit=budget, out_dtype=out_dtype)

    out = out_p[:batch, :out_dim]
    if regression:
        return out[..., 0]  # .squeeze(-1)
    return out


# -----------------------------------------------------------------------------
# Pure-JAX f32 reference (matches the PyTorch module's forward; erf GELU)
# -----------------------------------------------------------------------------
def methyl_mlp_reference(x, params, *, num_lin_blocks, cls=False, regression=False):
    g = functools.partial(jax.nn.gelu, approximate=False)   # F.gelu default (erf)
    h = g(x @ params["w_in"] + params["b_in"])
    for i in range(num_lin_blocks):
        h2 = h
        h = g(h @ params["w_lin"][2 * i] + params["b_lin"][2 * i])
        h = g(h @ params["w_lin"][2 * i + 1] + params["b_lin"][2 * i + 1]) + h2
    if regression:
        return (h @ params["w_reg"] + params["b_reg"])[..., 0]
    if cls:
        return h @ params["w_out"] + params["b_out"]
    return jax.nn.sigmoid(h @ params["w_emb"] + params["b_emb"])


# -----------------------------------------------------------------------------
# Deterministic parameter init (shapes from MethylMLP.__init__, stored (in, out))
# -----------------------------------------------------------------------------
def init_params(key, num_classes, num_inputs, num_lin_blocks, hidden_dim):
    ks = jax.random.split(key, 10)
    s_in = 1.0 / np.sqrt(num_inputs)
    s_h = 1.0 / np.sqrt(hidden_dim)
    n_lin = 2 * num_lin_blocks
    return {
        "w_in": jax.random.uniform(ks[0], (num_inputs, hidden_dim), jnp.float32, -s_in, s_in),
        "b_in": jax.random.uniform(ks[1], (1, hidden_dim), jnp.float32, -s_in, s_in),
        "w_lin": jax.random.uniform(ks[2], (n_lin, hidden_dim, hidden_dim), jnp.float32, -s_h, s_h),
        "b_lin": jax.random.uniform(ks[3], (n_lin, 1, hidden_dim), jnp.float32, -s_h, s_h),
        "w_emb": jax.random.uniform(ks[4], (hidden_dim, num_inputs), jnp.float32, -s_h, s_h),
        "b_emb": jax.random.uniform(ks[5], (1, num_inputs), jnp.float32, -s_h, s_h),
        "w_out": jax.random.uniform(ks[6], (hidden_dim, num_classes), jnp.float32, -s_h, s_h),
        "b_out": jax.random.uniform(ks[7], (1, num_classes), jnp.float32, -s_h, s_h),
        "w_reg": jax.random.uniform(ks[8], (hidden_dim, 1), jnp.float32, -s_h, s_h),
        "b_reg": jax.random.uniform(ks[9], (1, 1), jnp.float32, -s_h, s_h),
    }


# -----------------------------------------------------------------------------
# Main
# -----------------------------------------------------------------------------
if __name__ == "__main__":
    num_classes = 4
    num_lin_blocks = 2
    hidden_dim = 32
    key = jax.random.PRNGKey(0)
    ok = True

    def _check(out, ref):
        # bf16 MXU operands + tanh-GELU vs. the f32/erf reference -> loose tolerance.
        return np.allclose(np.asarray(out), np.asarray(ref), atol=5e-2, rtol=5e-2)

    # Config 1: tiny shapes, all three heads.
    pkey, xkey, key = jax.random.split(key, 3)
    params = init_params(pkey, num_classes, 16, num_lin_blocks, hidden_dim)
    x = jax.random.normal(xkey, (8, 16), jnp.float32)
    for kwargs in ({}, {"cls": True}, {"regression": True}):
        out = jax.block_until_ready(
            methyl_mlp_forward(x, params, num_lin_blocks=num_lin_blocks, **kwargs))
        ref = methyl_mlp_reference(x, params, num_lin_blocks=num_lin_blocks, **kwargs)
        if not _check(out, ref):
            ok = False
            print("MISMATCH (small config)", kwargs)

    # Config 2: wider num_inputs to exercise K-tiling of w_in and N-tiling of the
    # emb head (multi-step grid paths) while keeping shapes small.
    pkey, xkey = jax.random.split(key)
    params_w = init_params(pkey, num_classes, 2100, num_lin_blocks, hidden_dim)
    x_w = jax.random.normal(xkey, (40, 2100), jnp.float32)
    out = jax.block_until_ready(
        methyl_mlp_forward(x_w, params_w, num_lin_blocks=num_lin_blocks))
    ref = methyl_mlp_reference(x_w, params_w, num_lin_blocks=num_lin_blocks)
    if not _check(out, ref):
        ok = False
        print("MISMATCH (wide config)")

    if ok:
        print("KERNEL_OK")
</pallas_src>

<mosaic_0001>
module attributes {stable_mosaic.version = 11 : i64} {
  func.func @kernel(%arg0: i32, %arg1: i32, %arg2: memref<16x128xbf16, #tpu.memory_space<vmem>>, %arg3: memref<128x128xbf16, #tpu.memory_space<vmem>>, %arg4: memref<1x128xf32, #tpu.memory_space<vmem>>, %arg5: memref<4x128x128xbf16, #tpu.memory_space<vmem>>, %arg6: memref<4x1x128xf32, #tpu.memory_space<vmem>>, %arg7: memref<16x128xbf16, #tpu.memory_space<vmem>>, %arg8: memref<16x128xf32, #tpu.memory_space<vmem>>) attributes {dimension_semantics = [#tpu.dimension_semantics<parallel>, #tpu.dimension_semantics<arbitrary>], iteration_bounds = array<i64: 1, 1>, scalar_prefetch = 0 : i64, scratch_operands = 1 : i64, tpu.core_type = #tpu.core_type<tc>, window_params = [{transform_indices = @transform_0, window_bounds = array<i64: 16, 128>}, {transform_indices = @transform_1, window_bounds = array<i64: 128, 128>}, {pipeline_mode = #tpu.pipeline_mode<synchronous>, transform_indices = @transform_2, window_bounds = array<i64: 1, 128>}, {pipeline_mode = #tpu.pipeline_mode<synchronous>, transform_indices = @transform_3, window_bounds = array<i64: 4, 128, 128>}, {pipeline_mode = #tpu.pipeline_mode<synchronous>, transform_indices = @transform_4, window_bounds = array<i64: 4, 1, 128>}, {transform_indices = @transform_5, window_bounds = array<i64: 16, 128>}]} {
    %c0_i32 = arith.constant 0 : i32
    %0 = arith.cmpi eq, %arg1, %c0_i32 : i32
    %1 = arith.extui %0 : i1 to i32
    %c0_i32_0 = arith.constant 0 : i32
    %2 = arith.cmpi ne, %1, %c0_i32_0 : i32
    scf.if %2 {
      %cst_10 = arith.constant 0.000000e+00 : f32
      %12 = vector.broadcast %cst_10 : f32 to vector<16x128xf32>
      %c0_11 = arith.constant 0 : index
      %c0_12 = arith.constant 0 : index
      %13 = vector.load %arg8[%c0_11, %c0_12] : memref<16x128xf32, #tpu.memory_space<vmem>>, vector<16x128xf32>
      tpu.vector_store %arg8[%c0_11, %c0_12], %12 {strides = array<i32>} : memref<16x128xf32, #tpu.memory_space<vmem>>, vector<16x128xf32>,
    } else {
    }
    %c0 = arith.constant 0 : index
    %c0_1 = arith.constant 0 : index
    %3 = vector.load %arg8[%c0, %c0_1] : memref<16x128xf32, #tpu.memory_space<vmem>>, vector<16x128xf32>
    %c0_2 = arith.constant 0 : index
    %c0_3 = arith.constant 0 : index
    %4 = vector.load %arg2[%c0_2, %c0_3] : memref<16x128xbf16, #tpu.memory_space<vmem>>, vector<16x128xbf16>
    %c0_4 = arith.constant 0 : index
    %c0_5 = arith.constant 0 : index
    %5 = vector.load %arg3[%c0_4, %c0_5] : memref<128x128xbf16, #tpu.memory_space<vmem>>, vector<128x128xbf16>
    %cst = arith.constant dense<0.000000e+00> : vector<16x128xf32>
    %6 = tpu.matmul %4, %5, %cst {dimension_numbers = #tpu.dot_dimension_numbers<[1], [0], [0], [1], [0, 0, 1, 1], [], []>} : vector<16x128xbf16>, vector<128x128xbf16>, vector<16x128xf32> -> vector<16x128xf32>
    %7 = arith.addf %3, %6 : vector<16x128xf32>
    %c0_6 = arith.constant 0 : index
    %c0_7 = arith.constant 0 : index
    %8 = vector.load %arg8[%c0_6, %c0_7] : memref<16x128xf32, #tpu.memory_space<vmem>>, vector<16x128xf32>
    tpu.vector_store %arg8[%c0_6, %c0_7], %7 {strides = array<i32>} : memref<16x128xf32, #tpu.memory_space<vmem>>, vector<16x128xf32>,
    %c0_i32_8 = arith.constant 0 : i32
    %9 = arith.cmpi eq, %arg1, %c0_i32_8 : i32
    %10 = arith.extui %9 : i1 to i32
    %c0_i32_9 = arith.constant 0 : i32
    %11 = arith.cmpi ne, %10, %c0_i32_9 : i32
    scf.if %11 {
      %c0_10 = arith.constant 0 : index
      %c0_11 = arith.constant 0 : index
      %12 = vector.load %arg8[%c0_10, %c0_11] : memref<16x128xf32, #tpu.memory_space<vmem>>, vector<16x128xf32>
      %c0_12 = arith.constant 0 : index
      %c0_13 = arith.constant 0 : index
      %13 = vector.load %arg4[%c0_12, %c0_13] : memref<1x128xf32, #tpu.memory_space<vmem>>, vector<1x128xf32>
      %14 = vector.broadcast %13 : vector<1x128xf32> to vector<16x128xf32>
      %15 = arith.addf %12, %14 : vector<16x128xf32>
      %16 = arith.mulf %15, %15 : vector<16x128xf32>
      %17 = arith.mulf %15, %16 : vector<16x128xf32>
      %cst_14 = arith.constant 4.471500e-02 : f32
      %18 = vector.broadcast %cst_14 : f32 to vector<16x128xf32>
      %19 = arith.mulf %18, %17 : vector<16x128xf32>
      %20 = arith.addf %15, %19 : vector<16x128xf32>
      %cst_15 = arith.constant 0.797884583 : f32
      %21 = vector.broadcast %cst_15 : f32 to vector<16x128xf32>
      %22 = arith.mulf %21, %20 : vector<16x128xf32>
      %23 = math.tanh %22 : vector<16x128xf32>
      %cst_16 = arith.constant 1.000000e+00 : f32
      %24 = vector.broadcast %cst_16 : f32 to vector<16x128xf32>
      %25 = arith.addf %24, %23 : vector<16x128xf32>
      %cst_17 = arith.constant 5.000000e-01 : f32
      %26 = vector.broadcast %cst_17 : f32 to vector<16x128xf32>
      %27 = arith.mulf %26, %25 : vector<16x128xf32>
      %28 = arith.mulf %15, %27 : vector<16x128xf32>
      %29 = arith.truncf %28 : vector<16x128xf32> to vector<16x128xbf16>
      %c0_18 = arith.constant 0 : index
      %c0_19 = arith.constant 0 : index
      %c0_20 = arith.constant 0 : index
      %30 = vector.load %arg5[%c0_18, %c0_19, %c0_20] : memref<4x128x128xbf16, #tpu.memory_space<vmem>>, vector<1x128x128xbf16>
      %31 = vector.shape_cast %30 : vector<1x128x128xbf16> to vector<128x128xbf16>
      %cst_21 = arith.constant dense<0.000000e+00> : vector<16x128xf32>
      %32 = tpu.matmul %29, %31, %cst_21 {dimension_numbers = #tpu.dot_dimension_numbers<[1], [0], [0], [1], [0, 0, 1, 1], [], []>} : vector<16x128xbf16>, vector<128x128xbf16>, vector<16x128xf32> -> vector<16x128xf32>
      %c0_22 = arith.constant 0 : index
      %c0_23 = arith.constant 0 : index
      %c0_24 = arith.constant 0 : index
      %33 = vector.load %arg6[%c0_22, %c0_23, %c0_24] : memref<4x1x128xf32, #tpu.memory_space<vmem>>, vector<1x1x128xf32>
      %34 = vector.shape_cast %33 : vector<1x1x128xf32> to vector<1x128xf32>
      %35 = vector.broadcast %34 : vector<1x128xf32> to vector<16x128xf32>
      %36 = arith.addf %32, %35 : vector<16x128xf32>
      %37 = arith.mulf %36, %36 : vector<16x128xf32>
      %38 = arith.mulf %36, %37 : vector<16x128xf32>
      %cst_25 = arith.constant 4.471500e-02 : f32
      %39 = vector.broadcast %cst_25 : f32 to vector<16x128xf32>
      %40 = arith.mulf %39, %38 : vector<16x128xf32>
      %41 = arith.addf %36, %40 : vector<16x128xf32>
      %cst_26 = arith.constant 0.797884583 : f32
      %42 = vector.broadcast %cst_26 : f32 to vector<16x128xf32>
      %43 = arith.mulf %42, %41 : vector<16x128xf32>
      %44 = math.tanh %43 : vector<16x128xf32>
      %cst_27 = arith.constant 1.000000e+00 : f32
      %45 = vector.broadcast %cst_27 : f32 to vector<16x128xf32>
      %46 = arith.addf %45, %44 : vector<16x128xf32>
      %cst_28 = arith.constant 5.000000e-01 : f32
      %47 = vector.broadcast %cst_28 : f32 to vector<16x128xf32>
      %48 = arith.mulf %47, %46 : vector<16x128xf32>
      %49 = arith.mulf %36, %48 : vector<16x128xf32>
      %50 = arith.truncf %49 : vector<16x128xf32> to vector<16x128xbf16>
      %c1 = arith.constant 1 : index
      %c0_29 = arith.constant 0 : index
      %c0_30 = arith.constant 0 : index
      %51 = vector.load %arg5[%c1, %c0_29, %c0_30] : memref<4x128x128xbf16, #tpu.memory_space<vmem>>, vector<1x128x128xbf16>
      %52 = vector.shape_cast %51 : vector<1x128x128xbf16> to vector<128x128xbf16>
      %cst_31 = arith.constant dense<0.000000e+00> : vector<16x128xf32>
      %53 = tpu.matmul %50, %52, %cst_31 {dimension_numbers = #tpu.dot_dimension_numbers<[1], [0], [0], [1], [0, 0, 1, 1], [], []>} : vector<16x128xbf16>, vector<128x128xbf16>, vector<16x128xf32> -> vector<16x128xf32>
      %c1_32 = arith.constant 1 : index
      %c0_33 = arith.constant 0 : index
      %c0_34 = arith.constant 0 : index
      %54 = vector.load %arg6[%c1_32, %c0_33, %c0_34] : memref<4x1x128xf32, #tpu.memory_space<vmem>>, vector<1x1x128xf32>
      %55 = vector.shape_cast %54 : vector<1x1x128xf32> to vector<1x128xf32>
      %56 = vector.broadcast %55 : vector<1x128xf32> to vector<16x128xf32>
      %57 = arith.addf %53, %56 : vector<16x128xf32>
      %58 = arith.mulf %57, %57 : vector<16x128xf32>
      %59 = arith.mulf %57, %58 : vector<16x128xf32>
      %cst_35 = arith.constant 4.471500e-02 : f32
      %60 = vector.broadcast %cst_35 : f32 to vector<16x128xf32>
      %61 = arith.mulf %60, %59 : vector<16x128xf32>
      %62 = arith.addf %57, %61 : vector<16x128xf32>
      %cst_36 = arith.constant 0.797884583 : f32
      %63 = vector.broadcast %cst_36 : f32 to vector<16x128xf32>
      %64 = arith.mulf %63, %62 : vector<16x128xf32>
      %65 = math.tanh %64 : vector<16x128xf32>
      %cst_37 = arith.constant 1.000000e+00 : f32
      %66 = vector.broadcast %cst_37 : f32 to vector<16x128xf32>
      %67 = arith.addf %66, %65 : vector<16x128xf32>
      %cst_38 = arith.constant 5.000000e-01 : f32
      %68 = vector.broadcast %cst_38 : f32 to vector<16x128xf32>
      %69 = arith.mulf %68, %67 : vector<16x128xf32>
      %70 = arith.mulf %57, %69 : vector<16x128xf32>
      %71 = arith.addf %70, %28 : vector<16x128xf32>
      %72 = arith.truncf %71 : vector<16x128xf32> to vector<16x128xbf16>
      %c2 = arith.constant 2 : index
      %c0_39 = arith.constant 0 : index
      %c0_40 = arith.constant 0 : index
      %73 = vector.load %arg5[%c2, %c0_39, %c0_40] : memref<4x128x128xbf16, #tpu.memory_space<vmem>>, vector<1x128x128xbf16>
      %74 = vector.shape_cast %73 : vector<1x128x128xbf16> to vector<128x128xbf16>
      %cst_41 = arith.constant dense<0.000000e+00> : vector<16x128xf32>
      %75 = tpu.matmul %72, %74, %cst_41 {dimension_numbers = #tpu.dot_dimension_numbers<[1], [0], [0], [1], [0, 0, 1, 1], [], []>} : vector<16x128xbf16>, vector<128x128xbf16>, vector<16x128xf32> -> vector<16x128xf32>
      %c2_42 = arith.constant 2 : index
      %c0_43 = arith.constant 0 : index
      %c0_44 = arith.constant 0 : index
      %76 = vector.load %arg6[%c2_42, %c0_43, %c0_44] : memref<4x1x128xf32, #tpu.memory_space<vmem>>, vector<1x1x128xf32>
      %77 = vector.shape_cast %76 : vector<1x1x128xf32> to vector<1x128xf32>
      %78 = vector.broadcast %77 : vector<1x128xf32> to vector<16x128xf32>
      %79 = arith.addf %75, %78 : vector<16x128xf32>
      %80 = arith.mulf %79, %79 : vector<16x128xf32>
      %81 = arith.mulf %79, %80 : vector<16x128xf32>
      %cst_45 = arith.constant 4.471500e-02 : f32
      %82 = vector.broadcast %cst_45 : f32 to vector<16x128xf32>
      %83 = arith.mulf %82, %81 : vector<16x128xf32>
      %84 = arith.addf %79, %83 : vector<16x128xf32>
      %cst_46 = arith.constant 0.797884583 : f32
      %85 = vector.broadcast %cst_46 : f32 to vector<16x128xf32>
      %86 = arith.mulf %85, %84 : vector<16x128xf32>
      %87 = math.tanh %86 : vector<16x128xf32>
      %cst_47 = arith.constant 1.000000e+00 : f32
      %88 = vector.broadcast %cst_47 : f32 to vector<16x128xf32>
      %89 = arith.addf %88, %87 : vector<16x128xf32>
      %cst_48 = arith.constant 5.000000e-01 : f32
      %90 = vector.broadcast %cst_48 : f32 to vector<16x128xf32>
      %91 = arith.mulf %90, %89 : vector<16x128xf32>
      %92 = arith.mulf %79, %91 : vector<16x128xf32>
      %93 = arith.truncf %92 : vector<16x128xf32> to vector<16x128xbf16>
      %c3 = arith.constant 3 : index
      %c0_49 = arith.constant 0 : index
      %c0_50 = arith.constant 0 : index
      %94 = vector.load %arg5[%c3, %c0_49, %c0_50] : memref<4x128x128xbf16, #tpu.memory_space<vmem>>, vector<1x128x128xbf16>
      %95 = vector.shape_cast %94 : vector<1x128x128xbf16> to vector<128x128xbf16>
      %cst_51 = arith.constant dense<0.000000e+00> : vector<16x128xf32>
      %96 = tpu.matmul %93, %95, %cst_51 {dimension_numbers = #tpu.dot_dimension_numbers<[1], [0], [0], [1], [0, 0, 1, 1], [], []>} : vector<16x128xbf16>, vector<128x128xbf16>, vector<16x128xf32> -> vector<16x128xf32>
      %c3_52 = arith.constant 3 : index
      %c0_53 = arith.constant 0 : index
      %c0_54 = arith.constant 0 : index
      %97 = vector.load %arg6[%c3_52, %c0_53, %c0_54] : memref<4x1x128xf32, #tpu.memory_space<vmem>>, vector<1x1x128xf32>
      %98 = vector.shape_cast %97 : vector<1x1x128xf32> to vector<1x128xf32>
      %99 = vector.broadcast %98 : vector<1x128xf32> to vector<16x128xf32>
      %100 = arith.addf %96, %99 : vector<16x128xf32>
      %101 = arith.mulf %100, %100 : vector<16x128xf32>
      %102 = arith.mulf %100, %101 : vector<16x128xf32>
      %cst_55 = arith.constant 4.471500e-02 : f32
      %103 = vector.broadcast %cst_55 : f32 to vector<16x128xf32>
      %104 = arith.mulf %103, %102 : vector<16x128xf32>
      %105 = arith.addf %100, %104 : vector<16x128xf32>
      %cst_56 = arith.constant 0.797884583 : f32
      %106 = vector.broadcast %cst_56 : f32 to vector<16x128xf32>
      %107 = arith.mulf %106, %105 : vector<16x128xf32>
      %108 = math.tanh %107 : vector<16x128xf32>
      %cst_57 = arith.constant 1.000000e+00 : f32
      %109 = vector.broadcast %cst_57 : f32 to vector<16x128xf32>
      %110 = arith.addf %109, %108 : vector<16x128xf32>
      %cst_58 = arith.constant 5.000000e-01 : f32
      %111 = vector.broadcast %cst_58 : f32 to vector<16x128xf32>
      %112 = arith.mulf %111, %110 : vector<16x128xf32>
      %113 = arith.mulf %100, %112 : vector<16x128xf32>
      %114 = arith.addf %113, %71 : vector<16x128xf32>
      %115 = arith.truncf %114 : vector<16x128xf32> to vector<16x128xbf16>
      %c0_59 = arith.constant 0 : index
      %c0_60 = arith.constant 0 : index
      %116 = vector.load %arg7[%c0_59, %c0_60] : memref<16x128xbf16, #tpu.memory_space<vmem>>, vector<16x128xbf16>
      tpu.vector_store %arg7[%c0_59, %c0_60], %115 {strides = array<i32>} : memref<16x128xbf16, #tpu.memory_space<vmem>>, vector<16x128xbf16>,
    } else {
    }
    return
  }
  func.func @transform_0(%arg0: i32, %arg1: i32) -> (i32, i32) {
    %c0_i32 = arith.constant 0 : i32
    return %arg0, %arg1 : i32, i32
  }
  func.func @transform_1(%arg0: i32, %arg1: i32) -> (i32, i32) {
    %c0_i32 = arith.constant 0 : i32
    %c0_i32_0 = arith.constant 0 : i32
    return %arg1, %c0_i32 : i32, i32
  }
  func.func @transform_2(%arg0: i32, %arg1: i32) -> (i32, i32) {
    %c0_i32 = arith.constant 0 : i32
    %c0_i32_0 = arith.constant 0 : i32
    %c0_i32_1 = arith.constant 0 : i32
    return %c0_i32, %c0_i32_0 : i32, i32
  }
  func.func @transform_3(%arg0: i32, %arg1: i32) -> (i32, i32, i32) {
    %c0_i32 = arith.constant 0 : i32
    %c0_i32_0 = arith.constant 0 : i32
    %c0_i32_1 = arith.constant 0 : i32
    %c0_i32_2 = arith.constant 0 : i32
    return %c0_i32, %c0_i32_0, %c0_i32_1 : i32, i32, i32
  }
  func.func @transform_4(%arg0: i32, %arg1: i32) -> (i32, i32, i32) {
    %c0_i32 = arith.constant 0 : i32
    %c0_i32_0 = arith.constant 0 : i32
    %c0_i32_1 = arith.constant 0 : i32
    %c0_i32_2 = arith.constant 0 : i32
    return %c0_i32, %c0_i32_0, %c0_i32_1 : i32, i32, i32
  }
  func.func @transform_5(%arg0: i32, %arg1: i32) -> (i32, i32) {
    %c0_i32 = arith.constant 0 : i32
    %c0_i32_0 = arith.constant 0 : i32
    return %arg0, %c0_i32 : i32, i32
  }
}

module attributes {stable_mosaic.version = 11 : i64} {
  func.func @kernel(%arg0: i32, %arg1: i32, %arg2: memref<16x128xbf16, #tpu.memory_space<vmem>>, %arg3: memref<128x128xbf16, #tpu.memory_space<vmem>>, %arg4: memref<1x128xf32, #tpu.memory_space<vmem>>, %arg5: memref<4x128x128xbf16, #tpu.memory_space<vmem>>, %arg6: memref<4x1x128xf32, #tpu.memory_space<vmem>>, %arg7: memref<16x128xbf16, #tpu.memory_space<vmem>>, %arg8: memref<16x128xf32, #tpu.memory_space<vmem>>) attributes {dimension_semantics = [#tpu.dimension_semantics<parallel>, #tpu.dimension_semantics<arbitrary>], iteration_bounds = array<i64: 1, 1>, scalar_prefetch = 0 : i64, scratch_operands = 1 : i64, tpu.core_type = #tpu.core_type<tc>, window_params = [{transform_indices = @transform_0, window_bounds = array<i64: 16, 128>}, {transform_indices = @transform_1, window_bounds = array<i64: 128, 128>}, {pipeline_mode = #tpu.pipeline_mode<synchronous>, transform_indices = @transform_2, window_bounds = array<i64: 1, 128>}, {pipeline_mode = #tpu.pipeline_mode<synchronous>, transform_indices = @transform_3, window_bounds = array<i64: 4, 128, 128>}, {pipeline_mode = #tpu.pipeline_mode<synchronous>, transform_indices = @transform_4, window_bounds = array<i64: 4, 1, 128>}, {transform_indices = @transform_5, window_bounds = array<i64: 16, 128>}]} {
    %c0_i32 = arith.constant 0 : i32
    %0 = arith.cmpi eq, %arg1, %c0_i32 : i32
    %1 = arith.extui %0 : i1 to i32
    %c0_i32_0 = arith.constant 0 : i32
    %2 = arith.cmpi ne, %1, %c0_i32_0 : i32
    scf.if %2 {
      %cst_10 = arith.constant 0.000000e+00 : f32
      %12 = vector.broadcast %cst_10 : f32 to vector<16x128xf32>
      %c0_11 = arith.constant 0 : index
      %c0_12 = arith.constant 0 : index
      %13 = vector.load %arg8[%c0_11, %c0_12] : memref<16x128xf32, #tpu.memory_space<vmem>>, vector<16x128xf32>
      tpu.vector_store %arg8[%c0_11, %c0_12], %12 {strides = array<i32>} : memref<16x128xf32, #tpu.memory_space<vmem>>, vector<16x128xf32>,
    } else {
    }
    %c0 = arith.constant 0 : index
    %c0_1 = arith.constant 0 : index
    %3 = vector.load %arg8[%c0, %c0_1] : memref<16x128xf32, #tpu.memory_space<vmem>>, vector<16x128xf32>
    %c0_2 = arith.constant 0 : index
    %c0_3 = arith.constant 0 : index
    %4 = vector.load %arg2[%c0_2, %c0_3] : memref<16x128xbf16, #tpu.memory_space<vmem>>, vector<16x128xbf16>
    %c0_4 = arith.constant 0 : index
    %c0_5 = arith.constant 0 : index
    %5 = vector.load %arg3[%c0_4, %c0_5] : memref<128x128xbf16, #tpu.memory_space<vmem>>, vector<128x128xbf16>
    %cst = arith.constant dense<0.000000e+00> : vector<16x128xf32>
    %6 = tpu.matmul %4, %5, %cst {dimension_numbers = #tpu.dot_dimension_numbers<[1], [0], [0], [1], [0, 0, 1, 1], [], []>} : vector<16x128xbf16>, vector<128x128xbf16>, vector<16x128xf32> -> vector<16x128xf32>
    %7 = arith.addf %3, %6 : vector<16x128xf32>
    %c0_6 = arith.constant 0 : index
    %c0_7 = arith.constant 0 : index
    %8 = vector.load %arg8[%c0_6, %c0_7] : memref<16x128xf32, #tpu.memory_space<vmem>>, vector<16x128xf32>
    tpu.vector_store %arg8[%c0_6, %c0_7], %7 {strides = array<i32>} : memref<16x128xf32, #tpu.memory_space<vmem>>, vector<16x128xf32>,
    %c0_i32_8 = arith.constant 0 : i32
    %9 = arith.cmpi eq, %arg1, %c0_i32_8 : i32
    %10 = arith.extui %9 : i1 to i32
    %c0_i32_9 = arith.constant 0 : i32
    %11 = arith.cmpi ne, %10, %c0_i32_9 : i32
    scf.if %11 {
      %c0_10 = arith.constant 0 : index
      %c0_11 = arith.constant 0 : index
      %12 = vector.load %arg8[%c0_10, %c0_11] : memref<16x128xf32, #tpu.memory_space<vmem>>, vector<16x128xf32>
      %c0_12 = arith.constant 0 : index
      %c0_13 = arith.constant 0 : index
      %13 = vector.load %arg4[%c0_12, %c0_13] : memref<1x128xf32, #tpu.memory_space<vmem>>, vector<1x128xf32>
      %14 = vector.broadcast %13 : vector<1x128xf32> to vector<16x128xf32>
      %15 = arith.addf %12, %14 : vector<16x128xf32>
      %16 = arith.mulf %15, %15 : vector<16x128xf32>
      %17 = arith.mulf %15, %16 : vector<16x128xf32>
      %cst_14 = arith.constant 4.471500e-02 : f32
      %18 = vector.broadcast %cst_14 : f32 to vector<16x128xf32>
      %19 = arith.mulf %18, %17 : vector<16x128xf32>
      %20 = arith.addf %15, %19 : vector<16x128xf32>
      %cst_15 = arith.constant 0.797884583 : f32
      %21 = vector.broadcast %cst_15 : f32 to vector<16x128xf32>
      %22 = arith.mulf %21, %20 : vector<16x128xf32>
      %23 = math.tanh %22 : vector<16x128xf32>
      %cst_16 = arith.constant 1.000000e+00 : f32
      %24 = vector.broadcast %cst_16 : f32 to vector<16x128xf32>
      %25 = arith.addf %24, %23 : vector<16x128xf32>
      %cst_17 = arith.constant 5.000000e-01 : f32
      %26 = vector.broadcast %cst_17 : f32 to vector<16x128xf32>
      %27 = arith.mulf %26, %25 : vector<16x128xf32>
      %28 = arith.mulf %15, %27 : vector<16x128xf32>
      %29 = arith.truncf %28 : vector<16x128xf32> to vector<16x128xbf16>
      %c0_18 = arith.constant 0 : index
      %c0_19 = arith.constant 0 : index
      %c0_20 = arith.constant 0 : index
      %30 = vector.load %arg5[%c0_18, %c0_19, %c0_20] : memref<4x128x128xbf16, #tpu.memory_space<vmem>>, vector<1x128x128xbf16>
      %31 = vector.shape_cast %30 : vector<1x128x128xbf16> to vector<128x128xbf16>
      %cst_21 = arith.constant dense<0.000000e+00> : vector<16x128xf32>
      %32 = tpu.matmul %29, %31, %cst_21 {dimension_numbers = #tpu.dot_dimension_numbers<[1], [0], [0], [1], [0, 0, 1, 1], [], []>} : vector<16x128xbf16>, vector<128x128xbf16>, vector<16x128xf32> -> vector<16x128xf32>
      %c0_22 = arith.constant 0 : index
      %c0_23 = arith.constant 0 : index
      %c0_24 = arith.constant 0 : index
      %33 = vector.load %arg6[%c0_22, %c0_23, %c0_24] : memref<4x1x128xf32, #tpu.memory_space<vmem>>, vector<1x1x128xf32>
      %34 = vector.shape_cast %33 : vector<1x1x128xf32> to vector<1x128xf32>
      %35 = vector.broadcast %34 : vector<1x128xf32> to vector<16x128xf32>
      %36 = arith.addf %32, %35 : vector<16x128xf32>
      %37 = arith.mulf %36, %36 : vector<16x128xf32>
      %38 = arith.mulf %36, %37 : vector<16x128xf32>
      %cst_25 = arith.constant 4.471500e-02 : f32
      %39 = vector.broadcast %cst_25 : f32 to vector<16x128xf32>
      %40 = arith.mulf %39, %38 : vector<16x128xf32>
      %41 = arith.addf %36, %40 : vector<16x128xf32>
      %cst_26 = arith.constant 0.797884583 : f32
      %42 = vector.broadcast %cst_26 : f32 to vector<16x128xf32>
      %43 = arith.mulf %42, %41 : vector<16x128xf32>
      %44 = math.tanh %43 : vector<16x128xf32>
      %cst_27 = arith.constant 1.000000e+00 : f32
      %45 = vector.broadcast %cst_27 : f32 to vector<16x128xf32>
      %46 = arith.addf %45, %44 : vector<16x128xf32>
      %cst_28 = arith.constant 5.000000e-01 : f32
      %47 = vector.broadcast %cst_28 : f32 to vector<16x128xf32>
      %48 = arith.mulf %47, %46 : vector<16x128xf32>
      %49 = arith.mulf %36, %48 : vector<16x128xf32>
      %50 = arith.truncf %49 : vector<16x128xf32> to vector<16x128xbf16>
      %c1 = arith.constant 1 : index
      %c0_29 = arith.constant 0 : index
      %c0_30 = arith.constant 0 : index
      %51 = vector.load %arg5[%c1, %c0_29, %c0_30] : memref<4x128x128xbf16, #tpu.memory_space<vmem>>, vector<1x128x128xbf16>
      %52 = vector.shape_cast %51 : vector<1x128x128xbf16> to vector<128x128xbf16>
      %cst_31 = arith.constant dense<0.000000e+00> : vector<16x128xf32>
      %53 = tpu.matmul %50, %52, %cst_31 {dimension_numbers = #tpu.dot_dimension_numbers<[1], [0], [0], [1], [0, 0, 1, 1], [], []>} : vector<16x128xbf16>, vector<128x128xbf16>, vector<16x128xf32> -> vector<16x128xf32>
      %c1_32 = arith.constant 1 : index
      %c0_33 = arith.constant 0 : index
      %c0_34 = arith.constant 0 : index
      %54 = vector.load %arg6[%c1_32, %c0_33, %c0_34] : memref<4x1x128xf32, #tpu.memory_space<vmem>>, vector<1x1x128xf32>
      %55 = vector.shape_cast %54 : vector<1x1x128xf32> to vector<1x128xf32>
      %56 = vector.broadcast %55 : vector<1x128xf32> to vector<16x128xf32>
      %57 = arith.addf %53, %56 : vector<16x128xf32>
      %58 = arith.mulf %57, %57 : vector<16x128xf32>
      %59 = arith.mulf %57, %58 : vector<16x128xf32>
      %cst_35 = arith.constant 4.471500e-02 : f32
      %60 = vector.broadcast %cst_35 : f32 to vector<16x128xf32>
      %61 = arith.mulf %60, %59 : vector<16x128xf32>
      %62 = arith.addf %57, %61 : vector<16x128xf32>
      %cst_36 = arith.constant 0.797884583 : f32
      %63 = vector.broadcast %cst_36 : f32 to vector<16x128xf32>
      %64 = arith.mulf %63, %62 : vector<16x128xf32>
      %65 = math.tanh %64 : vector<16x128xf32>
      %cst_37 = arith.constant 1.000000e+00 : f32
      %66 = vector.broadcast %cst_37 : f32 to vector<16x128xf32>
      %67 = arith.addf %66, %65 : vector<16x128xf32>
      %cst_38 = arith.constant 5.000000e-01 : f32
      %68 = vector.broadcast %cst_38 : f32 to vector<16x128xf32>
      %69 = arith.mulf %68, %67 : vector<16x128xf32>
      %70 = arith.mulf %57, %69 : vector<16x128xf32>
      %71 = arith.addf %70, %28 : vector<16x128xf32>
      %72 = arith.truncf %71 : vector<16x128xf32> to vector<16x128xbf16>
      %c2 = arith.constant 2 : index
      %c0_39 = arith.constant 0 : index
      %c0_40 = arith.constant 0 : index
      %73 = vector.load %arg5[%c2, %c0_39, %c0_40] : memref<4x128x128xbf16, #tpu.memory_space<vmem>>, vector<1x128x128xbf16>
      %74 = vector.shape_cast %73 : vector<1x128x128xbf16> to vector<128x128xbf16>
      %cst_41 = arith.constant dense<0.000000e+00> : vector<16x128xf32>
      %75 = tpu.matmul %72, %74, %cst_41 {dimension_numbers = #tpu.dot_dimension_numbers<[1], [0], [0], [1], [0, 0, 1, 1], [], []>} : vector<16x128xbf16>, vector<128x128xbf16>, vector<16x128xf32> -> vector<16x128xf32>
      %c2_42 = arith.constant 2 : index
      %c0_43 = arith.constant 0 : index
      %c0_44 = arith.constant 0 : index
      %76 = vector.load %arg6[%c2_42, %c0_43, %c0_44] : memref<4x1x128xf32, #tpu.memory_space<vmem>>, vector<1x1x128xf32>
      %77 = vector.shape_cast %76 : vector<1x1x128xf32> to vector<1x128xf32>
      %78 = vector.broadcast %77 : vector<1x128xf32> to vector<16x128xf32>
      %79 = arith.addf %75, %78 : vector<16x128xf32>
      %80 = arith.mulf %79, %79 : vector<16x128xf32>
      %81 = arith.mulf %79, %80 : vector<16x128xf32>
      %cst_45 = arith.constant 4.471500e-02 : f32
      %82 = vector.broadcast %cst_45 : f32 to vector<16x128xf32>
      %83 = arith.mulf %82, %81 : vector<16x128xf32>
      %84 = arith.addf %79, %83 : vector<16x128xf32>
      %cst_46 = arith.constant 0.797884583 : f32
      %85 = vector.broadcast %cst_46 : f32 to vector<16x128xf32>
      %86 = arith.mulf %85, %84 : vector<16x128xf32>
      %87 = math.tanh %86 : vector<16x128xf32>
      %cst_47 = arith.constant 1.000000e+00 : f32
      %88 = vector.broadcast %cst_47 : f32 to vector<16x128xf32>
      %89 = arith.addf %88, %87 : vector<16x128xf32>
      %cst_48 = arith.constant 5.000000e-01 : f32
      %90 = vector.broadcast %cst_48 : f32 to vector<16x128xf32>
      %91 = arith.mulf %90, %89 : vector<16x128xf32>
      %92 = arith.mulf %79, %91 : vector<16x128xf32>
      %93 = arith.truncf %92 : vector<16x128xf32> to vector<16x128xbf16>
      %c3 = arith.constant 3 : index
      %c0_49 = arith.constant 0 : index
      %c0_50 = arith.constant 0 : index
      %94 = vector.load %arg5[%c3, %c0_49, %c0_50] : memref<4x128x128xbf16, #tpu.memory_space<vmem>>, vector<1x128x128xbf16>
      %95 = vector.shape_cast %94 : vector<1x128x128xbf16> to vector<128x128xbf16>
      %cst_51 = arith.constant dense<0.000000e+00> : vector<16x128xf32>
      %96 = tpu.matmul %93, %95, %cst_51 {dimension_numbers = #tpu.dot_dimension_numbers<[1], [0], [0], [1], [0, 0, 1, 1], [], []>} : vector<16x128xbf16>, vector<128x128xbf16>, vector<16x128xf32> -> vector<16x128xf32>
      %c3_52 = arith.constant 3 : index
      %c0_53 = arith.constant 0 : index
      %c0_54 = arith.constant 0 : index
      %97 = vector.load %arg6[%c3_52, %c0_53, %c0_54] : memref<4x1x128xf32, #tpu.memory_space<vmem>>, vector<1x1x128xf32>
      %98 = vector.shape_cast %97 : vector<1x1x128xf32> to vector<1x128xf32>
      %99 = vector.broadcast %98 : vector<1x128xf32> to vector<16x128xf32>
      %100 = arith.addf %96, %99 : vector<16x128xf32>
      %101 = arith.mulf %100, %100 : vector<16x128xf32>
      %102 = arith.mulf %100, %101 : vector<16x128xf32>
      %cst_55 = arith.constant 4.471500e-02 : f32
      %103 = vector.broadcast %cst_55 : f32 to vector<16x128xf32>
      %104 = arith.mulf %103, %102 : vector<16x128xf32>
      %105 = arith.addf %100, %104 : vector<16x128xf32>
      %cst_56 = arith.constant 0.797884583 : f32
      %106 = vector.broadcast %cst_56 : f32 to vector<16x128xf32>
      %107 = arith.mulf %106, %105 : vector<16x128xf32>
      %108 = math.tanh %107 : vector<16x128xf32>
      %cst_57 = arith.constant 1.000000e+00 : f32
      %109 = vector.broadcast %cst_57 : f32 to vector<16x128xf32>
      %110 = arith.addf %109, %108 : vector<16x128xf32>
      %cst_58 = arith.constant 5.000000e-01 : f32
      %111 = vector.broadcast %cst_58 : f32 to vector<16x128xf32>
      %112 = arith.mulf %111, %110 : vector<16x128xf32>
      %113 = arith.mulf %100, %112 : vector<16x128xf32>
      %114 = arith.addf %113, %71 : vector<16x128xf32>
      %115 = arith.truncf %114 : vector<16x128xf32> to vector<16x128xbf16>
      %c0_59 = arith.constant 0 : index
      %c0_60 = arith.constant 0 : index
      %116 = vector.load %arg7[%c0_59, %c0_60] : memref<16x128xbf16, #tpu.memory_space<vmem>>, vector<16x128xbf16>
      tpu.vector_store %arg7[%c0_59, %c0_60], %115 {strides = array<i32>} : memref<16x128xbf16, #tpu.memory_space<vmem>>, vector<16x128xbf16>,
    } else {
    }
    return
  }
  func.func @transform_0(%arg0: i32, %arg1: i32) -> (i32, i32) {
    %c0_i32 = arith.constant 0 : i32
    return %arg0, %arg1 : i32, i32
  }
  func.func @transform_1(%arg0: i32, %arg1: i32) -> (i32, i32) {
    %c0_i32 = arith.constant 0 : i32
    %c0_i32_0 = arith.constant 0 : i32
    return %arg1, %c0_i32 : i32, i32
  }
  func.func @transform_2(%arg0: i32, %arg1: i32) -> (i32, i32) {
    %c0_i32 = arith.constant 0 : i32
    %c0_i32_0 = arith.constant 0 : i32
    %c0_i32_1 = arith.constant 0 : i32
    return %c0_i32, %c0_i32_0 : i32, i32
  }
  func.func @transform_3(%arg0: i32, %arg1: i32) -> (i32, i32, i32) {
    %c0_i32 = arith.constant 0 : i32
    %c0_i32_0 = arith.constant 0 : i32
    %c0_i32_1 = arith.constant 0 : i32
    %c0_i32_2 = arith.constant 0 : i32
    return %c0_i32, %c0_i32_0, %c0_i32_1 : i32, i32, i32
  }
  func.func @transform_4(%arg0: i32, %arg1: i32) -> (i32, i32, i32) {
    %c0_i32 = arith.constant 0 : i32
    %c0_i32_0 = arith.constant 0 : i32
    %c0_i32_1 = arith.constant 0 : i32
    %c0_i32_2 = arith.constant 0 : i32
    return %c0_i32, %c0_i32_0, %c0_i32_1 : i32, i32, i32
  }
  func.func @transform_5(%arg0: i32, %arg1: i32) -> (i32, i32) {
    %c0_i32 = arith.constant 0 : i32
    %c0_i32_0 = arith.constant 0 : i32
    return %arg0, %c0_i32 : i32, i32
  }
}

</mosaic_0001>

<llo_original>
// kernel: tpu_custom_call.1
$region0: #{tpu_custom_call.1}
  #allocation0 [shape = 'u32[]', space=smem, size = 0x4, offset = 0x4, fixed_abs, tag = 'smem constant byte address 0x4 - core index']
  #allocation1 [shape = 'u32[72,128]{1,0:T(1,128)}', space=vmem, size = 0x9000, scoped, tag = 'internal scratch']
  #allocation2 [shape = 'f32[16,128]{1,0:T(8,128)}', space=vmem, size = 0x2000, scoped, tag = 'scratch operand']
  %s0 = inlined_call_operand.hbm [shape: bf16[16,128], index: 0, kind: input, shape index: {}]
  %s1 = inlined_call_operand.hbm [shape: bf16[128,128], index: 1, kind: input, shape index: {}]
  %s2 = inlined_call_operand.vmem [shape: f32[1,128], index: 2, kind: input, shape index: {}]
  %s3 = inlined_call_operand.hbm [shape: bf16[4,128,128], index: 3, kind: input, shape index: {}]
  %s4 = inlined_call_operand.hbm [shape: f32[4,1,128], index: 4, kind: input, shape index: {}]
  %s5 = inlined_call_operand.hbm [shape: bf16[16,128], index: 5, kind: output, shape index: {}]
  %s6 = sld [smem:[#allocation0]]
  $region54: #{tpu_custom_call.1} parent=0
    _
  %s8 = ssub.s32 1, %s6
  %s9 = scalar_select 0, %s8, %s6
  $region1: #{tpu_custom_call.1} parent=0
    #allocation3 [shape = 'u8[4096]{0}', space=vmem, size = 0x1000, scoped, tag = 'input window, operand 0, single buffered']
    #allocation4 [shape = 's32[1]{0}', space=sflag, size = 0x4, scoped, tag = 'scoped memory for tpu_custom_call.1']
    #allocation5 [shape = 's32[1]{0}', space=sflag, size = 0x4, scoped, tag = 'scoped memory for tpu_custom_call.1']
    #allocation6 [shape = 'u8[32768]{0}', space=vmem, size = 0x8000, scoped, tag = 'input window, operand 1, single buffered']
    #allocation7 [shape = 's32[1]{0}', space=sflag, size = 0x4, scoped, tag = 'scoped memory for tpu_custom_call.1']
    #allocation8 [shape = 'u8[131072]{0}', space=vmem, size = 0x20000, scoped, tag = 'input window, operand 3, single buffered']
    #allocation9 [shape = 'u8[2048]{0}', space=vmem, size = 0x800, scoped, tag = 'input window, operand 4, single buffered']
    #allocation10 [shape = 's32[1]{0}', space=sflag, size = 0x4, scoped, tag = 'scoped memory for tpu_custom_call.1']
    #allocation11 [shape = 'u8[4096]{0}', space=vmem, size = 0x1000, scoped, tag = 'output window, operand 0, single buffered']
    %10 = vsyncpa [#allocation4], 0
    %11 = vsyncpa [#allocation7], 0
    %12 = vsyncpa [#allocation10], 0
    %13 = vsyncpa [#allocation5], 0
    // Predicated region
    $region2: #{tpu_custom_call.1} parent=1 // pred_check
      _
    $region3: #{tpu_custom_call.1} parent=1 // pred_check_branch
      %15 = sbr.rel (0) target = $region5
    $region4: #{tpu_custom_call.1} parent=1 // pred_region
      %17 = vsyncadd [#allocation4], 0
      %s18 = sshll.u32 %s0, 4
      %s19 = int_to_ptr.hbm [resolvable:$true] %s18
      %s20 = sshll.u32 [#allocation3], 4
      %s21 = int_to_ptr.vmem [resolvable:$true] %s20
      %26 = dma.hbm_to_vmem [thread:$0]  %s19, 128, %s21, [#allocation4], 64, 64, 4
    $region5: #{tpu_custom_call.1} parent=1 // pred_fallthru
      _
    // Predicated region
    $region6: #{tpu_custom_call.1} parent=1 // pred_check
      _
    $region7: #{tpu_custom_call.1} parent=1 // pred_check_branch
      %28 = sbr.rel (0) target = $region9
    $region8: #{tpu_custom_call.1} parent=1 // pred_region
      %30 = vsyncadd [#allocation7], 0
      %s31 = sshll.u32 %s1, 4
      %s32 = int_to_ptr.hbm [resolvable:$true] %s31
      %s33 = sshll.u32 [#allocation6], 4
      %s34 = int_to_ptr.vmem [resolvable:$true] %s33
      %39 = dma.hbm_to_vmem [thread:$0]  %s32, 1024, %s34, [#allocation7], 64, 64, 4
    $region9: #{tpu_custom_call.1} parent=1 // pred_fallthru
      _
    // Predicated region
    $region10: #{tpu_custom_call.1} parent=1 // pred_check
      _
    $region11: #{tpu_custom_call.1} parent=1 // pred_check_branch
      %41 = sbr.rel (0) target = $region13
    $region12: #{tpu_custom_call.1} parent=1 // pred_region
      _
    $region13: #{tpu_custom_call.1} parent=1 // pred_fallthru
      _
    // Predicated region
    $region14: #{tpu_custom_call.1} parent=1 // pred_check
      _
    $region15: #{tpu_custom_call.1} parent=1 // pred_check_branch
      %43 = sbr.rel (0) target = $region17
    $region16: #{tpu_custom_call.1} parent=1 // pred_region
      %45 = vsyncadd [#allocation7], 0
      %s46 = sshll.u32 %s3, 4
      %s47 = int_to_ptr.hbm [resolvable:$true] %s46
      %s48 = sshll.u32 [#allocation8], 4
      %s49 = int_to_ptr.vmem [resolvable:$true] %s48
      %54 = dma.hbm_to_vmem [thread:$0]  %s47, 4096, %s49, [#allocation7], 64, 64, 4
    $region17: #{tpu_custom_call.1} parent=1 // pred_fallthru
      _
    // Predicated region
    $region18: #{tpu_custom_call.1} parent=1 // pred_check
      _
    $region19: #{tpu_custom_call.1} parent=1 // pred_check_branch
      %56 = sbr.rel (0) target = $region21
    $region20: #{tpu_custom_call.1} parent=1 // pred_region
      %58 = vsyncadd [#allocation10], 0
      %s59 = sshll.u32 %s4, 4
      %s60 = int_to_ptr.hbm [resolvable:$true] %s59
      %s61 = sshll.u32 [#allocation9], 4
      %s62 = int_to_ptr.vmem [resolvable:$true] %s61
      %67 = dma.hbm_to_vmem [thread:$0]  %s60, 64, %s62, [#allocation10], 16, 16, 1
    $region21: #{tpu_custom_call.1} parent=1 // pred_fallthru
      _
    // Predicated region
    $region22: #{tpu_custom_call.1} parent=1 // pred_check
      _
    $region23: #{tpu_custom_call.1} parent=1 // pred_check_branch
      %69 = sbr.rel (0) target = $region25
    $region24: #{tpu_custom_call.1} parent=1 // pred_region
      %71 = dma.done [#allocation4], 128
    $region25: #{tpu_custom_call.1} parent=1 // pred_fallthru
      _
    // Predicated region
    $region26: #{tpu_custom_call.1} parent=1 // pred_check
      _
    $region27: #{tpu_custom_call.1} parent=1 // pred_check_branch
      %73 = sbr.rel (0) target = $region29
    $region28: #{tpu_custom_call.1} parent=1 // pred_region
      %75 = dma.done [#allocation7], 1024
    $region29: #{tpu_custom_call.1} parent=1 // pred_fallthru
      _
    // Predicated region
    $region30: #{tpu_custom_call.1} parent=1 // pred_check
      _
    $region31: #{tpu_custom_call.1} parent=1 // pred_check_branch
      %77 = sbr.rel (0) target = $region33
    $region32: #{tpu_custom_call.1} parent=1 // pred_region
      %79 = dma.done [#allocation7], 4096
    $region33: #{tpu_custom_call.1} parent=1 // pred_fallthru
      _
    // Predicated region
    $region34: #{tpu_custom_call.1} parent=1 // pred_check
      _
    $region35: #{tpu_custom_call.1} parent=1 // pred_check_branch
      %81 = sbr.rel (0) target = $region37
    $region36: #{tpu_custom_call.1} parent=1 // pred_region
      %83 = dma.done [#allocation10], 64
    $region37: #{tpu_custom_call.1} parent=1 // pred_fallthru
      _
    %p84 = scmp.eq.s32.totalorder 0, 0
    // Predicated region
    $region38: #{tpu_custom_call.1} parent=1 // pred_check
      %p85 = pneg %p84
    $region39: #{tpu_custom_call.1} parent=1 // pred_check_branch
      %87 = sbr.rel (%p85) target = $region41
    $region40: #{tpu_custom_call.1} parent=1 // pred_region
      %88 = vst [vmem:[#allocation2] sm:$0xff] 0.0
      %89 = vst [vmem:[#allocation2 + $0x8] sm:$0xff] 0.0
    $region41: #{tpu_custom_call.1} parent=1 // pred_fallthru
      _
    %v90 = vld [vmem:[#allocation2] sm:$0xff]
    %v91 = vld [vmem:[#allocation2 + $0x8] sm:$0xff]
    %v92 = vld [vmem:[#allocation3] sm:$0xf]
    %v93 = vld [vmem:[#allocation3 + $0x4] sm:$0xf]
    %v94 = vld [vmem:[#allocation6] sm:$0xf]
    %v95 = vld [vmem:[#allocation6 + $0x4] sm:$0xf]
    %v96 = vld [vmem:[#allocation6 + $0x8] sm:$0xf]
    %v97 = vld [vmem:[#allocation6 + $0xc] sm:$0xf]
    %v98 = vld [vmem:[#allocation6 + $0x10] sm:$0xf]
    %v99 = vld [vmem:[#allocation6 + $0x14] sm:$0xf]
    %v100 = vld [vmem:[#allocation6 + $0x18] sm:$0xf]
    %v101 = vld [vmem:[#allocation6 + $0x1c] sm:$0xf]
    %v102 = vld [vmem:[#allocation6 + $0x20] sm:$0xf]
    %v103 = vld [vmem:[#allocation6 + $0x24] sm:$0xf]
    %v104 = vld [vmem:[#allocation6 + $0x28] sm:$0xf]
    %v105 = vld [vmem:[#allocation6 + $0x2c] sm:$0xf]
    %v106 = vld [vmem:[#allocation6 + $0x30] sm:$0xf]
    %v107 = vld [vmem:[#allocation6 + $0x34] sm:$0xf]
    %v108 = vld [vmem:[#allocation6 + $0x38] sm:$0xf]
    %v109 = vld [vmem:[#allocation6 + $0x3c] sm:$0xf]
    %v112 = vunpack.c.l.b16 %v92
    %v113 = vunpack.c.l.b16 %v93
    %v114 = vpack.c.b16 %v113, %v112
    %v132 = vunpack.c.l.b16 %v94
    %v133 = vunpack.c.l.b16 %v95
    %v134 = vunpack.c.l.b16 %v96
    %v135 = vunpack.c.l.b16 %v97
    %v136 = vunpack.c.l.b16 %v98
    %v137 = vunpack.c.l.b16 %v99
    %v138 = vunpack.c.l.b16 %v100
    %v139 = vunpack.c.l.b16 %v101
    %v140 = vunpack.c.l.b16 %v102
    %v141 = vunpack.c.l.b16 %v103
    %v142 = vunpack.c.l.b16 %v104
    %v143 = vunpack.c.l.b16 %v105
    %v144 = vunpack.c.l.b16 %v106
    %v145 = vunpack.c.l.b16 %v107
    %v146 = vunpack.c.l.b16 %v108
    %v147 = vunpack.c.l.b16 %v109
    %v148 = vpack.c.b16 %v133, %v132
    %v149 = vpack.c.b16 %v135, %v134
    %v150 = vpack.c.b16 %v137, %v136
    %v151 = vpack.c.b16 %v139, %v138
    %v152 = vpack.c.b16 %v141, %v140
    %v153 = vpack.c.b16 %v143, %v142
    %v154 = vpack.c.b16 %v145, %v144
    %v155 = vpack.c.b16 %v147, %v146
    %164 = vmatpush.bf16.msra.mxu0 %v155
    %165 = vmatpush.bf16.msra.mxu0 %v154
    %166 = vmatpush.bf16.msra.mxu0 %v153
    %167 = vmatpush.bf16.msra.mxu0 %v152
    %168 = vmatpush.bf16.msra.mxu0 %v151
    %169 = vmatpush.bf16.msra.mxu0 %v150
    %170 = vmatpush.bf16.msra.mxu0 %v149
    %171 = vmatpush.bf16.msra.mxu0 %v148
    %172 = vmatmul.bf16.gmra.mxu0 %v114
    %v173 = vpop.f32.mrf.mxu0
    %v174 = vadd.f32 0.0, %v173
    %v175 = vpop.f32.mrf.mxu0
    %v176 = vadd.f32 0.0, %v175
    %177 = vdwg.mxu0
    %v178 = vadd.f32 %v90, %v174
    %v179 = vadd.f32 %v91, %v176
    %180 = vst [vmem:[#allocation2] sm:$0xff] %v178
    %181 = vst [vmem:[#allocation2 + $0x8] sm:$0xff] %v179
    // Predicated region
    $region42: #{tpu_custom_call.1} parent=1 // pred_check
      %p182 = pneg %p84
    $region43: #{tpu_custom_call.1} parent=1 // pred_check_branch
      %184 = sbr.rel (%p182) target = $region45
    $region44: #{tpu_custom_call.1} parent=1 // pred_region
      %v185 = vld [vmem:[#allocation2] sm:$0xff]
      %v186 = vld [vmem:[#allocation2 + $0x8] sm:$0xff]
      %v187 = vld [vmem:[%s2] sm:$0x1]
      %v189 = vperm.slane %v187, 0
      %v191 = vadd.f32 %v185, %v189
      %v192 = vadd.f32 %v186, %v189
      %v193 = vmul.f32 %v191, %v191
      %v194 = vmul.f32 %v192, %v192
      %v195 = vmul.f32 %v191, %v193
      %v196 = vmul.f32 %v192, %v194
      %v197 = vmul.f32 %v195, 0.044715
      %v198 = vmul.f32 %v196, 0.044715
      %v199 = vadd.f32 %v191, %v197
      %v200 = vadd.f32 %v192, %v198
      %v201 = vmul.f32 %v199, 0.7978846
      %v202 = vmul.f32 %v200, 0.7978846
      %v203 = vtanh.pop %v201
      %v204 = vtanh.pop %v202
      %v205 = vadd.f32 %v203, 1.0
      %v206 = vadd.f32 %v204, 1.0
      %v207 = vmul.f32 %v205, 0.5
      %v208 = vmul.f32 %v206, 0.5
      %v209 = vmul.f32 %v191, %v207
      %v210 = vmul.f32 %v192, %v208
      %v211 = vpack.c.bf16 %v210, %v209
      %v212 = vld [vmem:[#allocation8] sm:$0xf]
      %v213 = vld [vmem:[#allocation8 + $0x4] sm:$0xf]
      %v214 = vld [vmem:[#allocation8 + $0x8] sm:$0xf]
      %v215 = vld [vmem:[#allocation8 + $0xc] sm:$0xf]
      %v216 = vld [vmem:[#allocation8 + $0x10] sm:$0xf]
      %v217 = vld [vmem:[#allocation8 + $0x14] sm:$0xf]
      %v218 = vld [vmem:[#allocation8 + $0x18] sm:$0xf]
      %v219 = vld [vmem:[#allocation8 + $0x1c] sm:$0xf]
      %v220 = vld [vmem:[#allocation8 + $0x20] sm:$0xf]
      %v221 = vld [vmem:[#allocation8 + $0x24] sm:$0xf]
      %v222 = vld [vmem:[#allocation8 + $0x28] sm:$0xf]
      %v223 = vld [vmem:[#allocation8 + $0x2c] sm:$0xf]
      %v224 = vld [vmem:[#allocation8 + $0x30] sm:$0xf]
      %v225 = vld [vmem:[#allocation8 + $0x34] sm:$0xf]
      %v226 = vld [vmem:[#allocation8 + $0x38] sm:$0xf]
      %v227 = vld [vmem:[#allocation8 + $0x3c] sm:$0xf]
      %v228 = vld [vmem:[#allocation9] sm:$0x1]
      %v230 = vperm.slane %v228, 0
      %v248 = vunpack.c.l.b16 %v212
      %v249 = vunpack.c.l.b16 %v213
      %v250 = vunpack.c.l.b16 %v214
      %v251 = vunpack.c.l.b16 %v215
      %v252 = vunpack.c.l.b16 %v216
      %v253 = vunpack.c.l.b16 %v217
      %v254 = vunpack.c.l.b16 %v218
      %v255 = vunpack.c.l.b16 %v219
      %v256 = vunpack.c.l.b16 %v220
      %v257 = vunpack.c.l.b16 %v221
      %v258 = vunpack.c.l.b16 %v222
      %v259 = vunpack.c.l.b16 %v223
      %v260 = vunpack.c.l.b16 %v224
      %v261 = vunpack.c.l.b16 %v225
      %v262 = vunpack.c.l.b16 %v226
      %v263 = vunpack.c.l.b16 %v227
      %v264 = vpack.c.b16 %v249, %v248
      %v265 = vpack.c.b16 %v251, %v250
      %v266 = vpack.c.b16 %v253, %v252
      %v267 = vpack.c.b16 %v255, %v254
      %v268 = vpack.c.b16 %v257, %v256
      %v269 = vpack.c.b16 %v259, %v258
      %v270 = vpack.c.b16 %v261, %v260
      %v271 = vpack.c.b16 %v263, %v262
      %280 = vmatpush.bf16.msra.mxu0 %v271
      %281 = vmatpush.bf16.msra.mxu0 %v270
      %282 = vmatpush.bf16.msra.mxu0 %v269
      %283 = vmatpush.bf16.msra.mxu0 %v268
      %284 = vmatpush.bf16.msra.mxu0 %v267
      %285 = vmatpush.bf16.msra.mxu0 %v266
      %286 = vmatpush.bf16.msra.mxu0 %v265
      %287 = vmatpush.bf16.msra.mxu0 %v264
      %288 = vmatmul.bf16.gmra.mxu0 %v211
      %v289 = vpop.f32.mrf.mxu0
      %v290 = vadd.f32 %v230, %v289
      %v291 = vpop.f32.mrf.mxu0
      %v292 = vadd.f32 %v230, %v291
      %293 = vdwg.mxu0
      %v294 = vmul.f32 %v290, %v290
      %v295 = vmul.f32 %v292, %v292
      %v296 = vmul.f32 %v290, %v294
      %v297 = vmul.f32 %v292, %v295
      %v298 = vmul.f32 %v296, 0.044715
      %v299 = vmul.f32 %v297, 0.044715
      %v300 = vadd.f32 %v290, %v298
      %v301 = vadd.f32 %v292, %v299
      %v302 = vmul.f32 %v300, 0.7978846
      %v303 = vmul.f32 %v301, 0.7978846
      %v304 = vtanh.pop %v302
      %v305 = vtanh.pop %v303
      %v306 = vadd.f32 %v304, 1.0
      %v307 = vadd.f32 %v305, 1.0
      %v308 = vmul.f32 %v306, 0.5
      %v309 = vmul.f32 %v307, 0.5
      %v310 = vmul.f32 %v290, %v308
      %v311 = vmul.f32 %v292, %v309
      %v312 = vpack.c.bf16 %v311, %v310
      %s313 = scalar_lea.vmem [#allocation8], 64
      %v314 = vld [vmem:[%s313] sm:$0xf]
      %v315 = vld [vmem:[%s313 + $0x4] sm:$0xf]
      %v316 = vld [vmem:[%s313 + $0x8] sm:$0xf]
      %v317 = vld [vmem:[%s313 + $0xc] sm:$0xf]
      %v318 = vld [vmem:[%s313 + $0x10] sm:$0xf]
      %v319 = vld [vmem:[%s313 + $0x14] sm:$0xf]
      %v320 = vld [vmem:[%s313 + $0x18] sm:$0xf]
      %v321 = vld [vmem:[%s313 + $0x1c] sm:$0xf]
      %v322 = vld [vmem:[%s313 + $0x20] sm:$0xf]
      %v323 = vld [vmem:[%s313 + $0x24] sm:$0xf]
      %v324 = vld [vmem:[%s313 + $0x28] sm:$0xf]
      %v325 = vld [vmem:[%s313 + $0x2c] sm:$0xf]
      %v326 = vld [vmem:[%s313 + $0x30] sm:$0xf]
      %v327 = vld [vmem:[%s313 + $0x34] sm:$0xf]
      %v328 = vld [vmem:[%s313 + $0x38] sm:$0xf]
      %v329 = vld [vmem:[%s313 + $0x3c] sm:$0xf]
      %s330 = scalar_lea.vmem [#allocation9], 1
      %v331 = vld [vmem:[%s330] sm:$0x1]
      %v333 = vperm.slane %v331, 0
      %v351 = vunpack.c.l.b16 %v314
      %v352 = vunpack.c.l.b16 %v315
      %v353 = vunpack.c.l.b16 %v316
      %v354 = vunpack.c.l.b16 %v317
      %v355 = vunpack.c.l.b16 %v318
      %v356 = vunpack.c.l.b16 %v319
      %v357 = vunpack.c.l.b16 %v320
      %v358 = vunpack.c.l.b16 %v321
      %v359 = vunpack.c.l.b16 %v322
      %v360 = vunpack.c.l.b16 %v323
      %v361 = vunpack.c.l.b16 %v324
      %v362 = vunpack.c.l.b16 %v325
      %v363 = vunpack.c.l.b16 %v326
      %v364 = vunpack.c.l.b16 %v327
      %v365 = vunpack.c.l.b16 %v328
      %v366 = vunpack.c.l.b16 %v329
      %v367 = vpack.c.b16 %v352, %v351
      %v368 = vpack.c.b16 %v354, %v353
      %v369 = vpack.c.b16 %v356, %v355
      %v370 = vpack.c.b16 %v358, %v357
      %v371 = vpack.c.b16 %v360, %v359
      %v372 = vpack.c.b16 %v362, %v361
      %v373 = vpack.c.b16 %v364, %v363
      %v374 = vpack.c.b16 %v366, %v365
      %383 = vmatpush.bf16.msra.mxu0 %v374
      %384 = vmatpush.bf16.msra.mxu0 %v373
      %385 = vmatpush.bf16.msra.mxu0 %v372
      %386 = vmatpush.bf16.msra.mxu0 %v371
      %387 = vmatpush.bf16.msra.mxu0 %v370
      %388 = vmatpush.bf16.msra.mxu0 %v369
      %389 = vmatpush.bf16.msra.mxu0 %v368
      %390 = vmatpush.bf16.msra.mxu0 %v367
      %391 = vmatmul.bf16.gmra.mxu0 %v312
      %v392 = vpop.f32.mrf.mxu0
      %v393 = vadd.f32 %v333, %v392
      %v394 = vpop.f32.mrf.mxu0
      %v395 = vadd.f32 %v333, %v394
      %396 = vdwg.mxu0
      %v397 = vmul.f32 %v393, %v393
      %v398 = vmul.f32 %v395, %v395
      %v399 = vmul.f32 %v393, %v397
      %v400 = vmul.f32 %v395, %v398
      %v401 = vmul.f32 %v399, 0.044715
      %v402 = vmul.f32 %v400, 0.044715
      %v403 = vadd.f32 %v393, %v401
      %v404 = vadd.f32 %v395, %v402
      %v405 = vmul.f32 %v403, 0.7978846
      %v406 = vmul.f32 %v404, 0.7978846
      %v407 = vtanh.pop %v405
      %v408 = vtanh.pop %v406
      %v409 = vadd.f32 %v407, 1.0
      %v410 = vadd.f32 %v408, 1.0
      %v411 = vmul.f32 %v409, 0.5
      %v412 = vmul.f32 %v410, 0.5
      %v413 = vmul.f32 %v393, %v411
      %v414 = vmul.f32 %v395, %v412
      %v415 = vadd.f32 %v413, %v209
      %v416 = vadd.f32 %v414, %v210
      %v417 = vpack.c.bf16 %v416, %v415
      %s418 = scalar_lea.vmem [#allocation8], 128
      %v419 = vld [vmem:[%s418] sm:$0xf]
      %v420 = vld [vmem:[%s418 + $0x4] sm:$0xf]
      %v421 = vld [vmem:[%s418 + $0x8] sm:$0xf]
      %v422 = vld [vmem:[%s418 + $0xc] sm:$0xf]
      %v423 = vld [vmem:[%s418 + $0x10] sm:$0xf]
      %v424 = vld [vmem:[%s418 + $0x14] sm:$0xf]
      %v425 = vld [vmem:[%s418 + $0x18] sm:$0xf]
      %v426 = vld [vmem:[%s418 + $0x1c] sm:$0xf]
      %v427 = vld [vmem:[%s418 + $0x20] sm:$0xf]
      %v428 = vld [vmem:[%s418 + $0x24] sm:$0xf]
      %v429 = vld [vmem:[%s418 + $0x28] sm:$0xf]
      %v430 = vld [vmem:[%s418 + $0x2c] sm:$0xf]
      %v431 = vld [vmem:[%s418 + $0x30] sm:$0xf]
      %v432 = vld [vmem:[%s418 + $0x34] sm:$0xf]
      %v433 = vld [vmem:[%s418 + $0x38] sm:$0xf]
      %v434 = vld [vmem:[%s418 + $0x3c] sm:$0xf]
      %s435 = scalar_lea.vmem [#allocation9], 2
      %v436 = vld [vmem:[%s435] sm:$0x1]
      %v438 = vperm.slane %v436, 0
      %v456 = vunpack.c.l.b16 %v419
      %v457 = vunpack.c.l.b16 %v420
      %v458 = vunpack.c.l.b16 %v421
      %v459 = vunpack.c.l.b16 %v422
      %v460 = vunpack.c.l.b16 %v423
      %v461 = vunpack.c.l.b16 %v424
      %v462 = vunpack.c.l.b16 %v425
      %v463 = vunpack.c.l.b16 %v426
      %v464 = vunpack.c.l.b16 %v427
      %v465 = vunpack.c.l.b16 %v428
      %v466 = vunpack.c.l.b16 %v429
      %v467 = vunpack.c.l.b16 %v430
      %v468 = vunpack.c.l.b16 %v431
      %v469 = vunpack.c.l.b16 %v432
      %v470 = vunpack.c.l.b16 %v433
      %v471 = vunpack.c.l.b16 %v434
      %v472 = vpack.c.b16 %v457, %v456
      %v473 = vpack.c.b16 %v459, %v458
      %v474 = vpack.c.b16 %v461, %v460
      %v475 = vpack.c.b16 %v463, %v462
      %v476 = vpack.c.b16 %v465, %v464
      %v477 = vpack.c.b16 %v467, %v466
      %v478 = vpack.c.b16 %v469, %v468
      %v479 = vpack.c.b16 %v471, %v470
      %488 = vmatpush.bf16.msra.mxu0 %v479
      %489 = vmatpush.bf16.msra.mxu0 %v478
      %490 = vmatpush.bf16.msra.mxu0 %v477
      %491 = vmatpush.bf16.msra.mxu0 %v476
      %492 = vmatpush.bf16.msra.mxu0 %v475
      %493 = vmatpush.bf16.msra.mxu0 %v474
      %494 = vmatpush.bf16.msra.mxu0 %v473
      %495 = vmatpush.bf16.msra.mxu0 %v472
      %496 = vmatmul.bf16.gmra.mxu0 %v417
      %v497 = vpop.f32.mrf.mxu0
      %v498 = vadd.f32 %v438, %v497
      %v499 = vpop.f32.mrf.mxu0
      %v500 = vadd.f32 %v438, %v499
      %501 = vdwg.mxu0
      %v502 = vmul.f32 %v498, %v498
      %v503 = vmul.f32 %v500, %v500
      %v504 = vmul.f32 %v498, %v502
      %v505 = vmul.f32 %v500, %v503
      %v506 = vmul.f32 %v504, 0.044715
      %v507 = vmul.f32 %v505, 0.044715
      %v508 = vadd.f32 %v498, %v506
      %v509 = vadd.f32 %v500, %v507
      %v510 = vmul.f32 %v508, 0.7978846
      %v511 = vmul.f32 %v509, 0.7978846
      %v512 = vtanh.pop %v510
      %v513 = vtanh.pop %v511
      %v514 = vadd.f32 %v512, 1.0
      %v515 = vadd.f32 %v513, 1.0
      %v516 = vmul.f32 %v514, 0.5
      %v517 = vmul.f32 %v515, 0.5
      %v518 = vmul.f32 %v498, %v516
      %v519 = vmul.f32 %v500, %v517
      %v520 = vpack.c.bf16 %v519, %v518
      %s521 = scalar_lea.vmem [#allocation8], 192
      %v522 = vld [vmem:[%s521] sm:$0xf]
      %v523 = vld [vmem:[%s521 + $0x4] sm:$0xf]
      %v524 = vld [vmem:[%s521 + $0x8] sm:$0xf]
      %v525 = vld [vmem:[%s521 + $0xc] sm:$0xf]
      %v526 = vld [vmem:[%s521 + $0x10] sm:$0xf]
      %v527 = vld [vmem:[%s521 + $0x14] sm:$0xf]
      %v528 = vld [vmem:[%s521 + $0x18] sm:$0xf]
      %v529 = vld [vmem:[%s521 + $0x1c] sm:$0xf]
      %v530 = vld [vmem:[%s521 + $0x20] sm:$0xf]
      %v531 = vld [vmem:[%s521 + $0x24] sm:$0xf]
      %v532 = vld [vmem:[%s521 + $0x28] sm:$0xf]
      %v533 = vld [vmem:[%s521 + $0x2c] sm:$0xf]
      %v534 = vld [vmem:[%s521 + $0x30] sm:$0xf]
      %v535 = vld [vmem:[%s521 + $0x34] sm:$0xf]
      %v536 = vld [vmem:[%s521 + $0x38] sm:$0xf]
      %v537 = vld [vmem:[%s521 + $0x3c] sm:$0xf]
      %s538 = scalar_lea.vmem [#allocation9], 3
      %v539 = vld [vmem:[%s538] sm:$0x1]
      %v541 = vperm.slane %v539, 0
      %v559 = vunpack.c.l.b16 %v522
      %v560 = vunpack.c.l.b16 %v523
      %v561 = vunpack.c.l.b16 %v524
      %v562 = vunpack.c.l.b16 %v525
      %v563 = vunpack.c.l.b16 %v526
      %v564 = vunpack.c.l.b16 %v527
      %v565 = vunpack.c.l.b16 %v528
      %v566 = vunpack.c.l.b16 %v529
      %v567 = vunpack.c.l.b16 %v530
      %v568 = vunpack.c.l.b16 %v531
      %v569 = vunpack.c.l.b16 %v532
      %v570 = vunpack.c.l.b16 %v533
      %v571 = vunpack.c.l.b16 %v534
      %v572 = vunpack.c.l.b16 %v535
      %v573 = vunpack.c.l.b16 %v536
      %v574 = vunpack.c.l.b16 %v537
      %v575 = vpack.c.b16 %v560, %v559
      %v576 = vpack.c.b16 %v562, %v561
      %v577 = vpack.c.b16 %v564, %v563
      %v578 = vpack.c.b16 %v566, %v565
      %v579 = vpack.c.b16 %v568, %v567
      %v580 = vpack.c.b16 %v570, %v569
      %v581 = vpack.c.b16 %v572, %v571
      %v582 = vpack.c.b16 %v574, %v573
      %591 = vmatpush.bf16.msra.mxu0 %v582
      %592 = vmatpush.bf16.msra.mxu0 %v581
      %593 = vmatpush.bf16.msra.mxu0 %v580
      %594 = vmatpush.bf16.msra.mxu0 %v579
      %595 = vmatpush.bf16.msra.mxu0 %v578
      %596 = vmatpush.bf16.msra.mxu0 %v577
      %597 = vmatpush.bf16.msra.mxu0 %v576
      %598 = vmatpush.bf16.msra.mxu0 %v575
      %599 = vmatmul.bf16.gmra.mxu0 %v520
      %v600 = vpop.f32.mrf.mxu0
      %v601 = vadd.f32 %v541, %v600
      %v602 = vpop.f32.mrf.mxu0
      %v603 = vadd.f32 %v541, %v602
      %604 = vdwg.mxu0
      %v605 = vmul.f32 %v601, %v601
      %v606 = vmul.f32 %v603, %v603
      %v607 = vmul.f32 %v601, %v605
      %v608 = vmul.f32 %v603, %v606
      %v609 = vmul.f32 %v607, 0.044715
      %v610 = vmul.f32 %v608, 0.044715
      %v611 = vadd.f32 %v601, %v609
      %v612 = vadd.f32 %v603, %v610
      %v613 = vmul.f32 %v611, 0.7978846
      %v614 = vmul.f32 %v612, 0.7978846
      %v615 = vtanh.pop %v613
      %v616 = vtanh.pop %v614
      %v617 = vadd.f32 %v615, 1.0
      %v618 = vadd.f32 %v616, 1.0
      %v619 = vmul.f32 %v617, 0.5
      %v620 = vmul.f32 %v618, 0.5
      %v621 = vmul.f32 %v601, %v619
      %v622 = vmul.f32 %v603, %v620
      %v623 = vadd.f32 %v621, %v415
      %v624 = vadd.f32 %v622, %v416
      %v625 = vpack.c.bf16 %v623, %v623
      %v626 = vpack.c.bf16 %v624, %v624
      %627 = vst [vmem:[#allocation11] sm:$0xf] %v625
      %628 = vst [vmem:[#allocation11 + $0x4] sm:$0xf] %v626
    $region45: #{tpu_custom_call.1} parent=1 // pred_fallthru
      _
    // Predicated region
    $region46: #{tpu_custom_call.1} parent=1 // pred_check
      _
    $region47: #{tpu_custom_call.1} parent=1 // pred_check_branch
      %630 = sbr.rel (0) target = $region49
    $region48: #{tpu_custom_call.1} parent=1 // pred_region
      %632 = vsyncadd [#allocation5], 0
      %s633 = sshll.u32 [#allocation11], 4
      %s634 = int_to_ptr.vmem [resolvable:$true] %s633
      %s635 = sshll.u32 %s5, 4
      %s636 = int_to_ptr.hbm [resolvable:$true] %s635
      %641 = dma.vmem_to_hbm [thread:$0]  %s634, 128, %s636, [#allocation5], 64, 64, 4
    $region49: #{tpu_custom_call.1} parent=1 // pred_fallthru
      _
    // Predicated region
    $region50: #{tpu_custom_call.1} parent=1 // pred_check
      _
    $region51: #{tpu_custom_call.1} parent=1 // pred_check_branch
      %643 = sbr.rel (0) target = $region53
    $region52: #{tpu_custom_call.1} parent=1 // pred_region
      %645 = dma.done [#allocation5], 128
    $region53: #{tpu_custom_call.1} parent=1 // pred_fallthru
      _
    %646 = vsyncpa [#allocation4], 1
    %647 = vsyncpa [#allocation7], 1
    %648 = vsyncpa [#allocation10], 1
    %649 = vsyncpa [#allocation5], 1

// kernel: tpu_custom_call.1
$region0: #{tpu_custom_call.1}
  #allocation0 [shape = 'u32[]', space=smem, size = 0x4, offset = 0x4, fixed_abs, tag = 'smem constant byte address 0x4 - core index']
  #allocation1 [shape = 'u32[72,128]{1,0:T(1,128)}', space=vmem, size = 0x9000, scoped, tag = 'internal scratch']
  #allocation2 [shape = 'f32[16,128]{1,0:T(8,128)}', space=vmem, size = 0x2000, scoped, tag = 'scratch operand']
  %s0 = inlined_call_operand.hbm [shape: bf16[16,128], index: 0, kind: input, shape index: {}]
  %s1 = inlined_call_operand.hbm [shape: bf16[128,128], index: 1, kind: input, shape index: {}]
  %s2 = inlined_call_operand.vmem [shape: f32[1,128], index: 2, kind: input, shape index: {}]
  %s3 = inlined_call_operand.hbm [shape: bf16[4,128,128], index: 3, kind: input, shape index: {}]
  %s4 = inlined_call_operand.hbm [shape: f32[4,1,128], index: 4, kind: input, shape index: {}]
  %s5 = inlined_call_operand.hbm [shape: bf16[16,128], index: 5, kind: output, shape index: {}]
  %s6 = sld [smem:[#allocation0]]
  $region54: #{tpu_custom_call.1} parent=0
    _
  %s8 = ssub.s32 1, %s6
  %s9 = scalar_select 0, %s8, %s6
  $region1: #{tpu_custom_call.1} parent=0
    #allocation3 [shape = 'u8[4096]{0}', space=vmem, size = 0x1000, scoped, tag = 'input window, operand 0, single buffered']
    #allocation4 [shape = 's32[1]{0}', space=sflag, size = 0x4, scoped, tag = 'scoped memory for tpu_custom_call.1']
    #allocation5 [shape = 's32[1]{0}', space=sflag, size = 0x4, scoped, tag = 'scoped memory for tpu_custom_call.1']
    #allocation6 [shape = 'u8[32768]{0}', space=vmem, size = 0x8000, scoped, tag = 'input window, operand 1, single buffered']
    #allocation7 [shape = 's32[1]{0}', space=sflag, size = 0x4, scoped, tag = 'scoped memory for tpu_custom_call.1']
    #allocation8 [shape = 'u8[131072]{0}', space=vmem, size = 0x20000, scoped, tag = 'input window, operand 3, single buffered']
    #allocation9 [shape = 'u8[2048]{0}', space=vmem, size = 0x800, scoped, tag = 'input window, operand 4, single buffered']
    #allocation10 [shape = 's32[1]{0}', space=sflag, size = 0x4, scoped, tag = 'scoped memory for tpu_custom_call.1']
    #allocation11 [shape = 'u8[4096]{0}', space=vmem, size = 0x1000, scoped, tag = 'output window, operand 0, single buffered']
    %10 = vsyncpa [#allocation4], 0
    %11 = vsyncpa [#allocation7], 0
    %12 = vsyncpa [#allocation10], 0
    %13 = vsyncpa [#allocation5], 0
    // Predicated region
    $region2: #{tpu_custom_call.1} parent=1 // pred_check
      _
    $region3: #{tpu_custom_call.1} parent=1 // pred_check_branch
      %15 = sbr.rel (0) target = $region5
    $region4: #{tpu_custom_call.1} parent=1 // pred_region
      %17 = vsyncadd [#allocation4], 0
      %s18 = sshll.u32 %s0, 4
      %s19 = int_to_ptr.hbm [resolvable:$true] %s18
      %s20 = sshll.u32 [#allocation3], 4
      %s21 = int_to_ptr.vmem [resolvable:$true] %s20
      %26 = dma.hbm_to_vmem [thread:$0]  %s19, 128, %s21, [#allocation4], 64, 64, 4
    $region5: #{tpu_custom_call.1} parent=1 // pred_fallthru
      _
    // Predicated region
    $region6: #{tpu_custom_call.1} parent=1 // pred_check
      _
    $region7: #{tpu_custom_call.1} parent=1 // pred_check_branch
      %28 = sbr.rel (0) target = $region9
    $region8: #{tpu_custom_call.1} parent=1 // pred_region
      %30 = vsyncadd [#allocation7], 0
      %s31 = sshll.u32 %s1, 4
      %s32 = int_to_ptr.hbm [resolvable:$true] %s31
      %s33 = sshll.u32 [#allocation6], 4
      %s34 = int_to_ptr.vmem [resolvable:$true] %s33
      %39 = dma.hbm_to_vmem [thread:$0]  %s32, 1024, %s34, [#allocation7], 64, 64, 4
    $region9: #{tpu_custom_call.1} parent=1 // pred_fallthru
      _
    // Predicated region
    $region10: #{tpu_custom_call.1} parent=1 // pred_check
      _
    $region11: #{tpu_custom_call.1} parent=1 // pred_check_branch
      %41 = sbr.rel (0) target = $region13
    $region12: #{tpu_custom_call.1} parent=1 // pred_region
      _
    $region13: #{tpu_custom_call.1} parent=1 // pred_fallthru
      _
    // Predicated region
    $region14: #{tpu_custom_call.1} parent=1 // pred_check
      _
    $region15: #{tpu_custom_call.1} parent=1 // pred_check_branch
      %43 = sbr.rel (0) target = $region17
    $region16: #{tpu_custom_call.1} parent=1 // pred_region
      %45 = vsyncadd [#allocation7], 0
      %s46 = sshll.u32 %s3, 4
      %s47 = int_to_ptr.hbm [resolvable:$true] %s46
      %s48 = sshll.u32 [#allocation8], 4
      %s49 = int_to_ptr.vmem [resolvable:$true] %s48
      %54 = dma.hbm_to_vmem [thread:$0]  %s47, 4096, %s49, [#allocation7], 64, 64, 4
    $region17: #{tpu_custom_call.1} parent=1 // pred_fallthru
      _
    // Predicated region
    $region18: #{tpu_custom_call.1} parent=1 // pred_check
      _
    $region19: #{tpu_custom_call.1} parent=1 // pred_check_branch
      %56 = sbr.rel (0) target = $region21
    $region20: #{tpu_custom_call.1} parent=1 // pred_region
      %58 = vsyncadd [#allocation10], 0
      %s59 = sshll.u32 %s4, 4
      %s60 = int_to_ptr.hbm [resolvable:$true] %s59
      %s61 = sshll.u32 [#allocation9], 4
      %s62 = int_to_ptr.vmem [resolvable:$true] %s61
      %67 = dma.hbm_to_vmem [thread:$0]  %s60, 64, %s62, [#allocation10], 16, 16, 1
    $region21: #{tpu_custom_call.1} parent=1 // pred_fallthru
      _
    // Predicated region
    $region22: #{tpu_custom_call.1} parent=1 // pred_check
      _
    $region23: #{tpu_custom_call.1} parent=1 // pred_check_branch
      %69 = sbr.rel (0) target = $region25
    $region24: #{tpu_custom_call.1} parent=1 // pred_region
      %71 = dma.done [#allocation4], 128
    $region25: #{tpu_custom_call.1} parent=1 // pred_fallthru
      _
    // Predicated region
    $region26: #{tpu_custom_call.1} parent=1 // pred_check
      _
    $region27: #{tpu_custom_call.1} parent=1 // pred_check_branch
      %73 = sbr.rel (0) target = $region29
    $region28: #{tpu_custom_call.1} parent=1 // pred_region
      %75 = dma.done [#allocation7], 1024
    $region29: #{tpu_custom_call.1} parent=1 // pred_fallthru
      _
    // Predicated region
    $region30: #{tpu_custom_call.1} parent=1 // pred_check
      _
    $region31: #{tpu_custom_call.1} parent=1 // pred_check_branch
      %77 = sbr.rel (0) target = $region33
    $region32: #{tpu_custom_call.1} parent=1 // pred_region
      %79 = dma.done [#allocation7], 4096
    $region33: #{tpu_custom_call.1} parent=1 // pred_fallthru
      _
    // Predicated region
    $region34: #{tpu_custom_call.1} parent=1 // pred_check
      _
    $region35: #{tpu_custom_call.1} parent=1 // pred_check_branch
      %81 = sbr.rel (0) target = $region37
    $region36: #{tpu_custom_call.1} parent=1 // pred_region
      %83 = dma.done [#allocation10], 64
    $region37: #{tpu_custom_call.1} parent=1 // pred_fallthru
      _
    %p84 = scmp.eq.s32.totalorder 0, 0
    // Predicated region
    $region38: #{tpu_custom_call.1} parent=1 // pred_check
      %p85 = pneg %p84
    $region39: #{tpu_custom_call.1} parent=1 // pred_check_branch
      %87 = sbr.rel (%p85) target = $region41
    $region40: #{tpu_custom_call.1} parent=1 // pred_region
      %88 = vst [vmem:[#allocation2] sm:$0xff] 0.0
      %89 = vst [vmem:[#allocation2 + $0x8] sm:$0xff] 0.0
    $region41: #{tpu_custom_call.1} parent=1 // pred_fallthru
      _
    %v90 = vld [vmem:[#allocation2] sm:$0xff]
    %v91 = vld [vmem:[#allocation2 + $0x8] sm:$0xff]
    %v92 = vld [vmem:[#allocation3] sm:$0xf]
    %v93 = vld [vmem:[#allocation3 + $0x4] sm:$0xf]
    %v94 = vld [vmem:[#allocation6] sm:$0xf]
    %v95 = vld [vmem:[#allocation6 + $0x4] sm:$0xf]
    %v96 = vld [vmem:[#allocation6 + $0x8] sm:$0xf]
    %v97 = vld [vmem:[#allocation6 + $0xc] sm:$0xf]
    %v98 = vld [vmem:[#allocation6 + $0x10] sm:$0xf]
    %v99 = vld [vmem:[#allocation6 + $0x14] sm:$0xf]
    %v100 = vld [vmem:[#allocation6 + $0x18] sm:$0xf]
    %v101 = vld [vmem:[#allocation6 + $0x1c] sm:$0xf]
    %v102 = vld [vmem:[#allocation6 + $0x20] sm:$0xf]
    %v103 = vld [vmem:[#allocation6 + $0x24] sm:$0xf]
    %v104 = vld [vmem:[#allocation6 + $0x28] sm:$0xf]
    %v105 = vld [vmem:[#allocation6 + $0x2c] sm:$0xf]
    %v106 = vld [vmem:[#allocation6 + $0x30] sm:$0xf]
    %v107 = vld [vmem:[#allocation6 + $0x34] sm:$0xf]
    %v108 = vld [vmem:[#allocation6 + $0x38] sm:$0xf]
    %v109 = vld [vmem:[#allocation6 + $0x3c] sm:$0xf]
    %v112 = vunpack.c.l.b16 %v92
    %v113 = vunpack.c.l.b16 %v93
    %v114 = vpack.c.b16 %v113, %v112
    %v132 = vunpack.c.l.b16 %v94
    %v133 = vunpack.c.l.b16 %v95
    %v134 = vunpack.c.l.b16 %v96
    %v135 = vunpack.c.l.b16 %v97
    %v136 = vunpack.c.l.b16 %v98
    %v137 = vunpack.c.l.b16 %v99
    %v138 = vunpack.c.l.b16 %v100
    %v139 = vunpack.c.l.b16 %v101
    %v140 = vunpack.c.l.b16 %v102
    %v141 = vunpack.c.l.b16 %v103
    %v142 = vunpack.c.l.b16 %v104
    %v143 = vunpack.c.l.b16 %v105
    %v144 = vunpack.c.l.b16 %v106
    %v145 = vunpack.c.l.b16 %v107
    %v146 = vunpack.c.l.b16 %v108
    %v147 = vunpack.c.l.b16 %v109
    %v148 = vpack.c.b16 %v133, %v132
    %v149 = vpack.c.b16 %v135, %v134
    %v150 = vpack.c.b16 %v137, %v136
    %v151 = vpack.c.b16 %v139, %v138
    %v152 = vpack.c.b16 %v141, %v140
    %v153 = vpack.c.b16 %v143, %v142
    %v154 = vpack.c.b16 %v145, %v144
    %v155 = vpack.c.b16 %v147, %v146
    %164 = vmatpush.bf16.msra.mxu0 %v155
    %165 = vmatpush.bf16.msra.mxu0 %v154
    %166 = vmatpush.bf16.msra.mxu0 %v153
    %167 = vmatpush.bf16.msra.mxu0 %v152
    %168 = vmatpush.bf16.msra.mxu0 %v151
    %169 = vmatpush.bf16.msra.mxu0 %v150
    %170 = vmatpush.bf16.msra.mxu0 %v149
    %171 = vmatpush.bf16.msra.mxu0 %v148
    %172 = vmatmul.bf16.gmra.mxu0 %v114
    %v173 = vpop.f32.mrf.mxu0
    %v174 = vadd.f32 0.0, %v173
    %v175 = vpop.f32.mrf.mxu0
    %v176 = vadd.f32 0.0, %v175
    %177 = vdwg.mxu0
    %v178 = vadd.f32 %v90, %v174
    %v179 = vadd.f32 %v91, %v176
    %180 = vst [vmem:[#allocation2] sm:$0xff] %v178
    %181 = vst [vmem:[#allocation2 + $0x8] sm:$0xff] %v179
    // Predicated region
    $region42: #{tpu_custom_call.1} parent=1 // pred_check
      %p182 = pneg %p84
    $region43: #{tpu_custom_call.1} parent=1 // pred_check_branch
      %184 = sbr.rel (%p182) target = $region45
    $region44: #{tpu_custom_call.1} parent=1 // pred_region
      %v185 = vld [vmem:[#allocation2] sm:$0xff]
      %v186 = vld [vmem:[#allocation2 + $0x8] sm:$0xff]
      %v187 = vld [vmem:[%s2] sm:$0x1]
      %v189 = vperm.slane %v187, 0
      %v191 = vadd.f32 %v185, %v189
      %v192 = vadd.f32 %v186, %v189
      %v193 = vmul.f32 %v191, %v191
      %v194 = vmul.f32 %v192, %v192
      %v195 = vmul.f32 %v191, %v193
      %v196 = vmul.f32 %v192, %v194
      %v197 = vmul.f32 %v195, 0.044715
      %v198 = vmul.f32 %v196, 0.044715
      %v199 = vadd.f32 %v191, %v197
      %v200 = vadd.f32 %v192, %v198
      %v201 = vmul.f32 %v199, 0.7978846
      %v202 = vmul.f32 %v200, 0.7978846
      %v203 = vtanh.pop %v201
      %v204 = vtanh.pop %v202
      %v205 = vadd.f32 %v203, 1.0
      %v206 = vadd.f32 %v204, 1.0
      %v207 = vmul.f32 %v205, 0.5
      %v208 = vmul.f32 %v206, 0.5
      %v209 = vmul.f32 %v191, %v207
      %v210 = vmul.f32 %v192, %v208
      %v211 = vpack.c.bf16 %v210, %v209
      %v212 = vld [vmem:[#allocation8] sm:$0xf]
      %v213 = vld [vmem:[#allocation8 + $0x4] sm:$0xf]
      %v214 = vld [vmem:[#allocation8 + $0x8] sm:$0xf]
      %v215 = vld [vmem:[#allocation8 + $0xc] sm:$0xf]
      %v216 = vld [vmem:[#allocation8 + $0x10] sm:$0xf]
      %v217 = vld [vmem:[#allocation8 + $0x14] sm:$0xf]
      %v218 = vld [vmem:[#allocation8 + $0x18] sm:$0xf]
      %v219 = vld [vmem:[#allocation8 + $0x1c] sm:$0xf]
      %v220 = vld [vmem:[#allocation8 + $0x20] sm:$0xf]
      %v221 = vld [vmem:[#allocation8 + $0x24] sm:$0xf]
      %v222 = vld [vmem:[#allocation8 + $0x28] sm:$0xf]
      %v223 = vld [vmem:[#allocation8 + $0x2c] sm:$0xf]
      %v224 = vld [vmem:[#allocation8 + $0x30] sm:$0xf]
      %v225 = vld [vmem:[#allocation8 + $0x34] sm:$0xf]
      %v226 = vld [vmem:[#allocation8 + $0x38] sm:$0xf]
      %v227 = vld [vmem:[#allocation8 + $0x3c] sm:$0xf]
      %v228 = vld [vmem:[#allocation9] sm:$0x1]
      %v230 = vperm.slane %v228, 0
      %v248 = vunpack.c.l.b16 %v212
      %v249 = vunpack.c.l.b16 %v213
      %v250 = vunpack.c.l.b16 %v214
      %v251 = vunpack.c.l.b16 %v215
      %v252 = vunpack.c.l.b16 %v216
      %v253 = vunpack.c.l.b16 %v217
      %v254 = vunpack.c.l.b16 %v218
      %v255 = vunpack.c.l.b16 %v219
      %v256 = vunpack.c.l.b16 %v220
      %v257 = vunpack.c.l.b16 %v221
      %v258 = vunpack.c.l.b16 %v222
      %v259 = vunpack.c.l.b16 %v223
      %v260 = vunpack.c.l.b16 %v224
      %v261 = vunpack.c.l.b16 %v225
      %v262 = vunpack.c.l.b16 %v226
      %v263 = vunpack.c.l.b16 %v227
      %v264 = vpack.c.b16 %v249, %v248
      %v265 = vpack.c.b16 %v251, %v250
      %v266 = vpack.c.b16 %v253, %v252
      %v267 = vpack.c.b16 %v255, %v254
      %v268 = vpack.c.b16 %v257, %v256
      %v269 = vpack.c.b16 %v259, %v258
      %v270 = vpack.c.b16 %v261, %v260
      %v271 = vpack.c.b16 %v263, %v262
      %280 = vmatpush.bf16.msra.mxu0 %v271
      %281 = vmatpush.bf16.msra.mxu0 %v270
      %282 = vmatpush.bf16.msra.mxu0 %v269
      %283 = vmatpush.bf16.msra.mxu0 %v268
      %284 = vmatpush.bf16.msra.mxu0 %v267
      %285 = vmatpush.bf16.msra.mxu0 %v266
      %286 = vmatpush.bf16.msra.mxu0 %v265
      %287 = vmatpush.bf16.msra.mxu0 %v264
      %288 = vmatmul.bf16.gmra.mxu0 %v211
      %v289 = vpop.f32.mrf.mxu0
      %v290 = vadd.f32 %v230, %v289
      %v291 = vpop.f32.mrf.mxu0
      %v292 = vadd.f32 %v230, %v291
      %293 = vdwg.mxu0
      %v294 = vmul.f32 %v290, %v290
      %v295 = vmul.f32 %v292, %v292
      %v296 = vmul.f32 %v290, %v294
      %v297 = vmul.f32 %v292, %v295
      %v298 = vmul.f32 %v296, 0.044715
      %v299 = vmul.f32 %v297, 0.044715
      %v300 = vadd.f32 %v290, %v298
      %v301 = vadd.f32 %v292, %v299
      %v302 = vmul.f32 %v300, 0.7978846
      %v303 = vmul.f32 %v301, 0.7978846
      %v304 = vtanh.pop %v302
      %v305 = vtanh.pop %v303
      %v306 = vadd.f32 %v304, 1.0
      %v307 = vadd.f32 %v305, 1.0
      %v308 = vmul.f32 %v306, 0.5
      %v309 = vmul.f32 %v307, 0.5
      %v310 = vmul.f32 %v290, %v308
      %v311 = vmul.f32 %v292, %v309
      %v312 = vpack.c.bf16 %v311, %v310
      %s313 = scalar_lea.vmem [#allocation8], 64
      %v314 = vld [vmem:[%s313] sm:$0xf]
      %v315 = vld [vmem:[%s313 + $0x4] sm:$0xf]
      %v316 = vld [vmem:[%s313 + $0x8] sm:$0xf]
      %v317 = vld [vmem:[%s313 + $0xc] sm:$0xf]
      %v318 = vld [vmem:[%s313 + $0x10] sm:$0xf]
      %v319 = vld [vmem:[%s313 + $0x14] sm:$0xf]
      %v320 = vld [vmem:[%s313 + $0x18] sm:$0xf]
      %v321 = vld [vmem:[%s313 + $0x1c] sm:$0xf]
      %v322 = vld [vmem:[%s313 + $0x20] sm:$0xf]
      %v323 = vld [vmem:[%s313 + $0x24] sm:$0xf]
      %v324 = vld [vmem:[%s313 + $0x28] sm:$0xf]
      %v325 = vld [vmem:[%s313 + $0x2c] sm:$0xf]
      %v326 = vld [vmem:[%s313 + $0x30] sm:$0xf]
      %v327 = vld [vmem:[%s313 + $0x34] sm:$0xf]
      %v328 = vld [vmem:[%s313 + $0x38] sm:$0xf]
      %v329 = vld [vmem:[%s313 + $0x3c] sm:$0xf]
      %s330 = scalar_lea.vmem [#allocation9], 1
      %v331 = vld [vmem:[%s330] sm:$0x1]
      %v333 = vperm.slane %v331, 0
      %v351 = vunpack.c.l.b16 %v314
      %v352 = vunpack.c.l.b16 %v315
      %v353 = vunpack.c.l.b16 %v316
      %v354 = vunpack.c.l.b16 %v317
      %v355 = vunpack.c.l.b16 %v318
      %v356 = vunpack.c.l.b16 %v319
      %v357 = vunpack.c.l.b16 %v320
      %v358 = vunpack.c.l.b16 %v321
      %v359 = vunpack.c.l.b16 %v322
      %v360 = vunpack.c.l.b16 %v323
      %v361 = vunpack.c.l.b16 %v324
      %v362 = vunpack.c.l.b16 %v325
      %v363 = vunpack.c.l.b16 %v326
      %v364 = vunpack.c.l.b16 %v327
      %v365 = vunpack.c.l.b16 %v328
      %v366 = vunpack.c.l.b16 %v329
      %v367 = vpack.c.b16 %v352, %v351
      %v368 = vpack.c.b16 %v354, %v353
      %v369 = vpack.c.b16 %v356, %v355
      %v370 = vpack.c.b16 %v358, %v357
      %v371 = vpack.c.b16 %v360, %v359
      %v372 = vpack.c.b16 %v362, %v361
      %v373 = vpack.c.b16 %v364, %v363
      %v374 = vpack.c.b16 %v366, %v365
      %383 = vmatpush.bf16.msra.mxu0 %v374
      %384 = vmatpush.bf16.msra.mxu0 %v373
      %385 = vmatpush.bf16.msra.mxu0 %v372
      %386 = vmatpush.bf16.msra.mxu0 %v371
      %387 = vmatpush.bf16.msra.mxu0 %v370
      %388 = vmatpush.bf16.msra.mxu0 %v369
      %389 = vmatpush.bf16.msra.mxu0 %v368
      %390 = vmatpush.bf16.msra.mxu0 %v367
      %391 = vmatmul.bf16.gmra.mxu0 %v312
      %v392 = vpop.f32.mrf.mxu0
      %v393 = vadd.f32 %v333, %v392
      %v394 = vpop.f32.mrf.mxu0
      %v395 = vadd.f32 %v333, %v394
      %396 = vdwg.mxu0
      %v397 = vmul.f32 %v393, %v393
      %v398 = vmul.f32 %v395, %v395
      %v399 = vmul.f32 %v393, %v397
      %v400 = vmul.f32 %v395, %v398
      %v401 = vmul.f32 %v399, 0.044715
      %v402 = vmul.f32 %v400, 0.044715
      %v403 = vadd.f32 %v393, %v401
      %v404 = vadd.f32 %v395, %v402
      %v405 = vmul.f32 %v403, 0.7978846
      %v406 = vmul.f32 %v404, 0.7978846
      %v407 = vtanh.pop %v405
      %v408 = vtanh.pop %v406
      %v409 = vadd.f32 %v407, 1.0
      %v410 = vadd.f32 %v408, 1.0
      %v411 = vmul.f32 %v409, 0.5
      %v412 = vmul.f32 %v410, 0.5
      %v413 = vmul.f32 %v393, %v411
      %v414 = vmul.f32 %v395, %v412
      %v415 = vadd.f32 %v413, %v209
      %v416 = vadd.f32 %v414, %v210
      %v417 = vpack.c.bf16 %v416, %v415
      %s418 = scalar_lea.vmem [#allocation8], 128
      %v419 = vld [vmem:[%s418] sm:$0xf]
      %v420 = vld [vmem:[%s418 + $0x4] sm:$0xf]
      %v421 = vld [vmem:[%s418 + $0x8] sm:$0xf]
      %v422 = vld [vmem:[%s418 + $0xc] sm:$0xf]
      %v423 = vld [vmem:[%s418 + $0x10] sm:$0xf]
      %v424 = vld [vmem:[%s418 + $0x14] sm:$0xf]
      %v425 = vld [vmem:[%s418 + $0x18] sm:$0xf]
      %v426 = vld [vmem:[%s418 + $0x1c] sm:$0xf]
      %v427 = vld [vmem:[%s418 + $0x20] sm:$0xf]
      %v428 = vld [vmem:[%s418 + $0x24] sm:$0xf]
      %v429 = vld [vmem:[%s418 + $0x28] sm:$0xf]
      %v430 = vld [vmem:[%s418 + $0x2c] sm:$0xf]
      %v431 = vld [vmem:[%s418 + $0x30] sm:$0xf]
      %v432 = vld [vmem:[%s418 + $0x34] sm:$0xf]
      %v433 = vld [vmem:[%s418 + $0x38] sm:$0xf]
      %v434 = vld [vmem:[%s418 + $0x3c] sm:$0xf]
      %s435 = scalar_lea.vmem [#allocation9], 2
      %v436 = vld [vmem:[%s435] sm:$0x1]
      %v438 = vperm.slane %v436, 0
      %v456 = vunpack.c.l.b16 %v419
      %v457 = vunpack.c.l.b16 %v420
      %v458 = vunpack.c.l.b16 %v421
      %v459 = vunpack.c.l.b16 %v422
      %v460 = vunpack.c.l.b16 %v423
      %v461 = vunpack.c.l.b16 %v424
      %v462 = vunpack.c.l.b16 %v425
      %v463 = vunpack.c.l.b16 %v426
      %v464 = vunpack.c.l.b16 %v427
      %v465 = vunpack.c.l.b16 %v428
      %v466 = vunpack.c.l.b16 %v429
      %v467 = vunpack.c.l.b16 %v430
      %v468 = vunpack.c.l.b16 %v431
      %v469 = vunpack.c.l.b16 %v432
      %v470 = vunpack.c.l.b16 %v433
      %v471 = vunpack.c.l.b16 %v434
      %v472 = vpack.c.b16 %v457, %v456
      %v473 = vpack.c.b16 %v459, %v458
      %v474 = vpack.c.b16 %v461, %v460
      %v475 = vpack.c.b16 %v463, %v462
      %v476 = vpack.c.b16 %v465, %v464
      %v477 = vpack.c.b16 %v467, %v466
      %v478 = vpack.c.b16 %v469, %v468
      %v479 = vpack.c.b16 %v471, %v470
      %488 = vmatpush.bf16.msra.mxu0 %v479
      %489 = vmatpush.bf16.msra.mxu0 %v478
      %490 = vmatpush.bf16.msra.mxu0 %v477
      %491 = vmatpush.bf16.msra.mxu0 %v476
      %492 = vmatpush.bf16.msra.mxu0 %v475
      %493 = vmatpush.bf16.msra.mxu0 %v474
      %494 = vmatpush.bf16.msra.mxu0 %v473
      %495 = vmatpush.bf16.msra.mxu0 %v472
      %496 = vmatmul.bf16.gmra.mxu0 %v417
      %v497 = vpop.f32.mrf.mxu0
      %v498 = vadd.f32 %v438, %v497
      %v499 = vpop.f32.mrf.mxu0
      %v500 = vadd.f32 %v438, %v499
      %501 = vdwg.mxu0
      %v502 = vmul.f32 %v498, %v498
      %v503 = vmul.f32 %v500, %v500
      %v504 = vmul.f32 %v498, %v502
      %v505 = vmul.f32 %v500, %v503
      %v506 = vmul.f32 %v504, 0.044715
      %v507 = vmul.f32 %v505, 0.044715
      %v508 = vadd.f32 %v498, %v506
      %v509 = vadd.f32 %v500, %v507
      %v510 = vmul.f32 %v508, 0.7978846
      %v511 = vmul.f32 %v509, 0.7978846
      %v512 = vtanh.pop %v510
      %v513 = vtanh.pop %v511
      %v514 = vadd.f32 %v512, 1.0
      %v515 = vadd.f32 %v513, 1.0
      %v516 = vmul.f32 %v514, 0.5
      %v517 = vmul.f32 %v515, 0.5
      %v518 = vmul.f32 %v498, %v516
      %v519 = vmul.f32 %v500, %v517
      %v520 = vpack.c.bf16 %v519, %v518
      %s521 = scalar_lea.vmem [#allocation8], 192
      %v522 = vld [vmem:[%s521] sm:$0xf]
      %v523 = vld [vmem:[%s521 + $0x4] sm:$0xf]
      %v524 = vld [vmem:[%s521 + $0x8] sm:$0xf]
      %v525 = vld [vmem:[%s521 + $0xc] sm:$0xf]
      %v526 = vld [vmem:[%s521 + $0x10] sm:$0xf]
      %v527 = vld [vmem:[%s521 + $0x14] sm:$0xf]
      %v528 = vld [vmem:[%s521 + $0x18] sm:$0xf]
      %v529 = vld [vmem:[%s521 + $0x1c] sm:$0xf]
      %v530 = vld [vmem:[%s521 + $0x20] sm:$0xf]
      %v531 = vld [vmem:[%s521 + $0x24] sm:$0xf]
      %v532 = vld [vmem:[%s521 + $0x28] sm:$0xf]
      %v533 = vld [vmem:[%s521 + $0x2c] sm:$0xf]
      %v534 = vld [vmem:[%s521 + $0x30] sm:$0xf]
      %v535 = vld [vmem:[%s521 + $0x34] sm:$0xf]
      %v536 = vld [vmem:[%s521 + $0x38] sm:$0xf]
      %v537 = vld [vmem:[%s521 + $0x3c] sm:$0xf]
      %s538 = scalar_lea.vmem [#allocation9], 3
      %v539 = vld [vmem:[%s538] sm:$0x1]
      %v541 = vperm.slane %v539, 0
      %v559 = vunpack.c.l.b16 %v522
      %v560 = vunpack.c.l.b16 %v523
      %v561 = vunpack.c.l.b16 %v524
      %v562 = vunpack.c.l.b16 %v525
      %v563 = vunpack.c.l.b16 %v526
      %v564 = vunpack.c.l.b16 %v527
      %v565 = vunpack.c.l.b16 %v528
      %v566 = vunpack.c.l.b16 %v529
      %v567 = vunpack.c.l.b16 %v530
      %v568 = vunpack.c.l.b16 %v531
      %v569 = vunpack.c.l.b16 %v532
      %v570 = vunpack.c.l.b16 %v533
      %v571 = vunpack.c.l.b16 %v534
      %v572 = vunpack.c.l.b16 %v535
      %v573 = vunpack.c.l.b16 %v536
      %v574 = vunpack.c.l.b16 %v537
      %v575 = vpack.c.b16 %v560, %v559
      %v576 = vpack.c.b16 %v562, %v561
      %v577 = vpack.c.b16 %v564, %v563
      %v578 = vpack.c.b16 %v566, %v565
      %v579 = vpack.c.b16 %v568, %v567
      %v580 = vpack.c.b16 %v570, %v569
      %v581 = vpack.c.b16 %v572, %v571
      %v582 = vpack.c.b16 %v574, %v573
      %591 = vmatpush.bf16.msra.mxu0 %v582
      %592 = vmatpush.bf16.msra.mxu0 %v581
      %593 = vmatpush.bf16.msra.mxu0 %v580
      %594 = vmatpush.bf16.msra.mxu0 %v579
      %595 = vmatpush.bf16.msra.mxu0 %v578
      %596 = vmatpush.bf16.msra.mxu0 %v577
      %597 = vmatpush.bf16.msra.mxu0 %v576
      %598 = vmatpush.bf16.msra.mxu0 %v575
      %599 = vmatmul.bf16.gmra.mxu0 %v520
      %v600 = vpop.f32.mrf.mxu0
      %v601 = vadd.f32 %v541, %v600
      %v602 = vpop.f32.mrf.mxu0
      %v603 = vadd.f32 %v541, %v602
      %604 = vdwg.mxu0
      %v605 = vmul.f32 %v601, %v601
      %v606 = vmul.f32 %v603, %v603
      %v607 = vmul.f32 %v601, %v605
      %v608 = vmul.f32 %v603, %v606
      %v609 = vmul.f32 %v607, 0.044715
      %v610 = vmul.f32 %v608, 0.044715
      %v611 = vadd.f32 %v601, %v609
      %v612 = vadd.f32 %v603, %v610
      %v613 = vmul.f32 %v611, 0.7978846
      %v614 = vmul.f32 %v612, 0.7978846
      %v615 = vtanh.pop %v613
      %v616 = vtanh.pop %v614
      %v617 = vadd.f32 %v615, 1.0
      %v618 = vadd.f32 %v616, 1.0
      %v619 = vmul.f32 %v617, 0.5
      %v620 = vmul.f32 %v618, 0.5
      %v621 = vmul.f32 %v601, %v619
      %v622 = vmul.f32 %v603, %v620
      %v623 = vadd.f32 %v621, %v415
      %v624 = vadd.f32 %v622, %v416
      %v625 = vpack.c.bf16 %v623, %v623
      %v626 = vpack.c.bf16 %v624, %v624
      %627 = vst [vmem:[#allocation11] sm:$0xf] %v625
      %628 = vst [vmem:[#allocation11 + $0x4] sm:$0xf] %v626
    $region45: #{tpu_custom_call.1} parent=1 // pred_fallthru
      _
    // Predicated region
    $region46: #{tpu_custom_call.1} parent=1 // pred_check
      _
    $region47: #{tpu_custom_call.1} parent=1 // pred_check_branch
      %630 = sbr.rel (0) target = $region49
    $region48: #{tpu_custom_call.1} parent=1 // pred_region
      %632 = vsyncadd [#allocation5], 0
      %s633 = sshll.u32 [#allocation11], 4
      %s634 = int_to_ptr.vmem [resolvable:$true] %s633
      %s635 = sshll.u32 %s5, 4
      %s636 = int_to_ptr.hbm [resolvable:$true] %s635
      %641 = dma.vmem_to_hbm [thread:$0]  %s634, 128, %s636, [#allocation5], 64, 64, 4
    $region49: #{tpu_custom_call.1} parent=1 // pred_fallthru
      _
    // Predicated region
    $region50: #{tpu_custom_call.1} parent=1 // pred_check
      _
    $region51: #{tpu_custom_call.1} parent=1 // pred_check_branch
      %643 = sbr.rel (0) target = $region53
    $region52: #{tpu_custom_call.1} parent=1 // pred_region
      %645 = dma.done [#allocation5], 128
    $region53: #{tpu_custom_call.1} parent=1 // pred_fallthru
      _
    %646 = vsyncpa [#allocation4], 1
    %647 = vsyncpa [#allocation7], 1
    %648 = vsyncpa [#allocation10], 1
    %649 = vsyncpa [#allocation5], 1

</llo_original>
